<compile_context>
chip_gen: v7x
topology: tpu7x:2x2x1
jax: 0.10.0
libtpu: 0.0.40
codegen_flags: <defaults>
</compile_context>

<pallas_src>
import functools

import jax
import jax.numpy as jnp
import numpy as np
from jax.experimental import pallas as pl
from jax.experimental.pallas import tpu as pltpu


# -----------------------------------------------------------------------------
# Fused kernel: conv ('same', odd kernel) + GroupNorm + (folded) affine/scale-
# shift + SiLU, for one batch sample per grid step.
# -----------------------------------------------------------------------------
def _baseblock2d_kernel(x_ref, w_ref, mask_ref, gm_ref, ga_ref, be_ref, o_ref,
                        *, width, kh_size, kw_size, eps):
    cout = o_ref.shape[0]
    hw = o_ref.shape[1]
    pw = kw_size // 2

    # ---- convolution: unrolled tap loop, f32 accumulation -------------------
    # x_ref is the row-padded, flattened, lane-padded sample (Cin, Lp); the
    # window for tap (kh, kw) is a static lane slice of it.
    acc = jnp.zeros((cout, hw), jnp.float32)
    for kh in range(kh_size):
        for kw in range(kw_size):
            base = kh * width + kw                       # static python int
            win = x_ref[:, base:base + hw]               # (Cin, H*W)
            if kw != pw:                                 # width wrap-around
                win = win * mask_ref[kw:kw + 1, :]
            acc = acc + jnp.dot(w_ref[kh * kw_size + kw], win,
                                preferred_element_type=jnp.float32)

    # ---- GroupNorm (two-pass; group aggregation via a tiny constant matmul) -
    # gm[i, j] = 1/(channels_per_group * H*W) if i, j share a group, else 0,
    # so a lane-sum of (gm @ y) gives each channel its group mean.
    mean = jnp.sum(jnp.dot(gm_ref[...], acc, preferred_element_type=jnp.float32),
                   axis=1, keepdims=True)                # (Cout, 1)
    d = acc - mean
    var = jnp.sum(jnp.dot(gm_ref[...], d * d, preferred_element_type=jnp.float32),
                  axis=1, keepdims=True)                 # (Cout, 1)
    xhat = d * jax.lax.rsqrt(var + eps)

    # ---- affine (GroupNorm gamma/beta with scale/shift folded in) + SiLU ----
    y = xhat * ga_ref[...] + be_ref[...]                 # (Cout, H*W)
    o_ref[...] = (y * (1.0 / (1.0 + jnp.exp(-y)))).astype(o_ref.dtype)


# -----------------------------------------------------------------------------
# Wrapper: layout prep (cheap, O(input)/O(params)) + single pallas_call.
# -----------------------------------------------------------------------------
def baseblock2d_forward(x, params, scale_shift_list=None, *,
                        num_groups, eps=1e-5, compute_dtype=jnp.float32):
    cw = params["conv_w"]          # (Cout, Cin, KH, KW), PyTorch OIHW layout
    gamma = params["gn_gamma"]     # (Cout,)
    beta = params["gn_beta"]       # (Cout,)

    N, Cin, H, W = x.shape
    Cout, Cin_w, KH, KW = cw.shape
    assert Cin_w == Cin
    assert KH % 2 == 1 and KW % 2 == 1, "padding='same' with odd kernel only"
    assert Cout % num_groups == 0
    ph, pw = KH // 2, KW // 2
    HW = H * W
    T = KH * KW
    cpg = Cout // num_groups

    # Input: pad rows, flatten spatial, pad lanes -> (N, Cin, Lp). Single copy
    # (~(1 + (KH-1)/H)x), NOT a T-times im2col in HBM.
    xp = jnp.pad(x, ((0, 0), (0, 0), (ph, ph), (0, 0)))
    xp = xp.reshape(N, Cin, (H + 2 * ph) * W)
    xp = jnp.pad(xp, ((0, 0), (0, 0), (pw, pw))).astype(compute_dtype)
    Lp = xp.shape[-1]

    # Per-tap weights: (T, Cout, Cin), t = kh*KW + kw.
    w_taps = jnp.transpose(cw, (2, 3, 0, 1)).reshape(T, Cout, Cin)
    w_taps = w_taps.astype(compute_dtype)

    # Column-validity masks (handle width wrap-around of the flat layout),
    # one row per kw: (KW, H*W).
    col = jnp.arange(HW, dtype=jnp.int32) % W
    dws = jnp.arange(KW, dtype=jnp.int32) - pw
    col_mask = ((col[None, :] + dws[:, None] >= 0) &
                (col[None, :] + dws[:, None] < W)).astype(compute_dtype)

    # Group-mean matrix for the in-kernel GroupNorm reduction.
    gidx = jnp.arange(Cout, dtype=jnp.int32) // cpg
    gm = (gidx[:, None] == gidx[None, :]).astype(jnp.float32) / float(cpg * HW)

    # Fold GroupNorm affine + optional scale/shift list into per-(n, c)
    # scale/offset applied to the normalized activations:
    #   (xhat*g + b) * (s+1) + t  ==  xhat*(g*(s+1)) + (b*(s+1) + t)
    g_eff = jnp.broadcast_to(gamma.astype(jnp.float32)[None, :], (N, Cout))
    b_eff = jnp.broadcast_to(beta.astype(jnp.float32)[None, :], (N, Cout))
    if scale_shift_list is not None:
        for scale, shift in scale_shift_list:
            s = scale.reshape(N, Cout).astype(jnp.float32)
            t = shift.reshape(N, Cout).astype(jnp.float32)
            g_eff = g_eff * (s + 1.0)
            b_eff = b_eff * (s + 1.0) + t
    g_eff = g_eff.reshape(N, Cout, 1)
    b_eff = b_eff.reshape(N, Cout, 1)

    kernel = functools.partial(_baseblock2d_kernel, width=W,
                               kh_size=KH, kw_size=KW, eps=float(eps))

    out = pl.pallas_call(
        kernel,
        out_shape=jax.ShapeDtypeStruct((N, Cout, HW), x.dtype),
        grid=(N,),
        in_specs=[
            # per-sample padded input (DMA'd once per grid step)
            pl.BlockSpec((None, Cin, Lp), lambda n: (n, 0, 0)),
            # constant index_maps -> weights / masks / group matrix are not
            # re-fetched per batch step
            pl.BlockSpec((T, Cout, Cin), lambda n: (0, 0, 0)),
            pl.BlockSpec((KW, HW), lambda n: (0, 0)),
            pl.BlockSpec((Cout, Cout), lambda n: (0, 0)),
            # per-sample folded affine parameters
            pl.BlockSpec((None, Cout, 1), lambda n: (n, 0, 0)),
            pl.BlockSpec((None, Cout, 1), lambda n: (n, 0, 0)),
        ],
        out_specs=pl.BlockSpec((None, Cout, HW), lambda n: (n, 0, 0)),
        compiler_params=pltpu.CompilerParams(
            dimension_semantics=("parallel",),
            vmem_limit_bytes=32 * 1024 * 1024,
        ),
    )(xp, w_taps, col_mask, gm, g_eff, b_eff)

    return out.reshape(N, Cout, H, W)


# -----------------------------------------------------------------------------
# Parameter init (mimics PyTorch Conv2d default init; GroupNorm affine params
# randomized slightly so the affine path is actually exercised).
# -----------------------------------------------------------------------------
def init_baseblock2d_params(key, in_channels, out_channels, kernel_size,
                            dtype=jnp.float32):
    k_w, k_g, k_b = jax.random.split(key, 3)
    fan_in = in_channels * kernel_size * kernel_size
    bound = 1.0 / np.sqrt(fan_in)
    conv_w = jax.random.uniform(
        k_w, (out_channels, in_channels, kernel_size, kernel_size), dtype,
        minval=-bound, maxval=bound)
    gn_gamma = 1.0 + 0.1 * jax.random.normal(k_g, (out_channels,), dtype)
    gn_beta = 0.1 * jax.random.normal(k_b, (out_channels,), dtype)
    return dict(conv_w=conv_w, gn_gamma=gn_gamma, gn_beta=gn_beta)


# -----------------------------------------------------------------------------
# Pure-JAX reference (BaseBlock2D forward semantics).
# -----------------------------------------------------------------------------
def baseblock2d_ref(x, params, scale_shift_list=None, *, num_groups, eps=1e-5):
    cw = params["conv_w"]
    gamma = params["gn_gamma"]
    beta = params["gn_beta"]
    conv = jax.lax.conv_general_dilated(
        x, cw, window_strides=(1, 1), padding="SAME",
        dimension_numbers=("NCHW", "OIHW", "NCHW"),
        precision=jax.lax.Precision.HIGHEST)
    N, C, H, W = conv.shape
    g = conv.reshape(N, num_groups, C // num_groups, H, W)
    mean = jnp.mean(g, axis=(2, 3, 4), keepdims=True)
    var = jnp.mean((g - mean) ** 2, axis=(2, 3, 4), keepdims=True)
    xhat = ((g - mean) / jnp.sqrt(var + eps)).reshape(N, C, H, W)
    norm = xhat * gamma[None, :, None, None] + beta[None, :, None, None]
    if scale_shift_list is not None:
        for scale, shift in scale_shift_list:
            norm = norm * (scale + 1.0) + shift
    return norm * jax.nn.sigmoid(norm)


if __name__ == "__main__":
    key = jax.random.PRNGKey(0)
    k_x, k_p, k_s, k_t = jax.random.split(key, 4)

    N, C_in, H, W = 2, 4, 16, 16
    C_out, ksize, num_groups = 8, 3, 2

    x = jax.random.normal(k_x, (N, C_in, H, W), jnp.float32)   # NCHW like PyTorch
    params = init_baseblock2d_params(k_p, C_in, C_out, ksize)

    scale = 0.1 * jax.random.normal(k_s, (N, C_out, 1, 1), jnp.float32)
    shift = 0.1 * jax.random.normal(k_t, (N, C_out, 1, 1), jnp.float32)
    scale_shift_list = [(scale, shift)]

    ref = jax.block_until_ready(
        baseblock2d_ref(x, params, scale_shift_list, num_groups=num_groups))

    # --- f32 compute path: tight correctness check ---------------------------
    fwd_f32 = jax.jit(functools.partial(
        baseblock2d_forward, num_groups=num_groups, compute_dtype=jnp.float32))
    out_f32 = jax.block_until_ready(fwd_f32(x, params, scale_shift_list))
    assert out_f32.shape == (N, C_out, H, W), out_f32.shape
    np.testing.assert_allclose(np.asarray(out_f32), np.asarray(ref),
                               atol=1e-3, rtol=1e-3)

    # --- bf16-in / f32-accumulate path (recommended on v6e/v7x) --------------
    fwd_bf16 = jax.jit(functools.partial(
        baseblock2d_forward, num_groups=num_groups, compute_dtype=jnp.bfloat16))
    out_bf16 = jax.block_until_ready(fwd_bf16(x, params, scale_shift_list))
    np.testing.assert_allclose(np.asarray(out_bf16), np.asarray(ref),
                               atol=3e-2, rtol=3e-2)

    print("KERNEL_OK")
</pallas_src>

<mosaic_0001>
module attributes {stable_mosaic.version = 11 : i64} {
  func.func @_baseblock2d_kernel(%arg0: i32, %arg1: memref<1x4x290xf32, #tpu.memory_space<vmem>>, %arg2: memref<9x8x4xf32, #tpu.memory_space<vmem>>, %arg3: memref<3x256xf32, #tpu.memory_space<vmem>>, %arg4: memref<8x8xf32, #tpu.memory_space<vmem>>, %arg5: memref<1x8x1xf32, #tpu.memory_space<vmem>>, %arg6: memref<1x8x1xf32, #tpu.memory_space<vmem>>, %arg7: memref<1x8x256xf32, #tpu.memory_space<vmem>>) attributes {dimension_semantics = [#tpu.dimension_semantics<parallel>], iteration_bounds = array<i64: 2>, scalar_prefetch = 0 : i64, scratch_operands = 0 : i64, tpu.core_type = #tpu.core_type<tc>, window_params = [{transform_indices = @transform_0, window_bounds = array<i64: 1, 4, 290>}, {pipeline_mode = #tpu.pipeline_mode<synchronous>, transform_indices = @transform_1, window_bounds = array<i64: 9, 8, 4>}, {pipeline_mode = #tpu.pipeline_mode<synchronous>, transform_indices = @transform_2, window_bounds = array<i64: 3, 256>}, {pipeline_mode = #tpu.pipeline_mode<synchronous>, transform_indices = @transform_3, window_bounds = array<i64: 8, 8>}, {transform_indices = @transform_4, window_bounds = array<i64: 1, 8, 1>}, {transform_indices = @transform_5, window_bounds = array<i64: 1, 8, 1>}, {transform_indices = @transform_6, window_bounds = array<i64: 1, 8, 256>}]} {
    %cst = arith.constant 0.000000e+00 : f32
    %0 = vector.broadcast %cst : f32 to vector<8x256xf32>
    %c0 = arith.constant 0 : index
    %c0_0 = arith.constant 0 : index
    %c0_1 = arith.constant 0 : index
    %1 = vector.load %arg1[%c0, %c0_0, %c0_1] : memref<1x4x290xf32, #tpu.memory_space<vmem>>, vector<1x4x256xf32>
    %2 = vector.shape_cast %1 : vector<1x4x256xf32> to vector<4x256xf32>
    %c0_2 = arith.constant 0 : index
    %c0_3 = arith.constant 0 : index
    %3 = vector.load %arg3[%c0_2, %c0_3] : memref<3x256xf32, #tpu.memory_space<vmem>>, vector<1x256xf32>
    %4 = vector.broadcast %3 : vector<1x256xf32> to vector<4x256xf32>
    %5 = arith.mulf %2, %4 : vector<4x256xf32>
    %c0_4 = arith.constant 0 : index
    %c0_5 = arith.constant 0 : index
    %c0_6 = arith.constant 0 : index
    %6 = vector.load %arg2[%c0_4, %c0_5, %c0_6] : memref<9x8x4xf32, #tpu.memory_space<vmem>>, vector<1x8x4xf32>
    %7 = vector.shape_cast %6 : vector<1x8x4xf32> to vector<8x4xf32>
    %cst_7 = arith.constant dense<0.000000e+00> : vector<8x256xf32>
    %8 = tpu.matmul %7, %5, %cst_7 {dimension_numbers = #tpu.dot_dimension_numbers<[1], [0], [0], [1], [0, 0, 1, 1], [], []>} : vector<8x4xf32>, vector<4x256xf32>, vector<8x256xf32> -> vector<8x256xf32>
    %9 = arith.addf %0, %8 : vector<8x256xf32>
    %c0_8 = arith.constant 0 : index
    %c0_9 = arith.constant 0 : index
    %c1 = arith.constant 1 : index
    %10 = vector.load %arg1[%c0_8, %c0_9, %c1] : memref<1x4x290xf32, #tpu.memory_space<vmem>>, vector<1x4x256xf32>
    %11 = vector.shape_cast %10 : vector<1x4x256xf32> to vector<4x256xf32>
    %c1_10 = arith.constant 1 : index
    %c0_11 = arith.constant 0 : index
    %c0_12 = arith.constant 0 : index
    %12 = vector.load %arg2[%c1_10, %c0_11, %c0_12] : memref<9x8x4xf32, #tpu.memory_space<vmem>>, vector<1x8x4xf32>
    %13 = vector.shape_cast %12 : vector<1x8x4xf32> to vector<8x4xf32>
    %cst_13 = arith.constant dense<0.000000e+00> : vector<8x256xf32>
    %14 = tpu.matmul %13, %11, %cst_13 {dimension_numbers = #tpu.dot_dimension_numbers<[1], [0], [0], [1], [0, 0, 1, 1], [], []>} : vector<8x4xf32>, vector<4x256xf32>, vector<8x256xf32> -> vector<8x256xf32>
    %15 = arith.addf %9, %14 : vector<8x256xf32>
    %c0_14 = arith.constant 0 : index
    %c0_15 = arith.constant 0 : index
    %c2 = arith.constant 2 : index
    %16 = vector.load %arg1[%c0_14, %c0_15, %c2] : memref<1x4x290xf32, #tpu.memory_space<vmem>>, vector<1x4x256xf32>
    %17 = vector.shape_cast %16 : vector<1x4x256xf32> to vector<4x256xf32>
    %c2_16 = arith.constant 2 : index
    %c0_17 = arith.constant 0 : index
    %18 = vector.load %arg3[%c2_16, %c0_17] : memref<3x256xf32, #tpu.memory_space<vmem>>, vector<1x256xf32>
    %19 = vector.broadcast %18 : vector<1x256xf32> to vector<4x256xf32>
    %20 = arith.mulf %17, %19 : vector<4x256xf32>
    %c2_18 = arith.constant 2 : index
    %c0_19 = arith.constant 0 : index
    %c0_20 = arith.constant 0 : index
    %21 = vector.load %arg2[%c2_18, %c0_19, %c0_20] : memref<9x8x4xf32, #tpu.memory_space<vmem>>, vector<1x8x4xf32>
    %22 = vector.shape_cast %21 : vector<1x8x4xf32> to vector<8x4xf32>
    %cst_21 = arith.constant dense<0.000000e+00> : vector<8x256xf32>
    %23 = tpu.matmul %22, %20, %cst_21 {dimension_numbers = #tpu.dot_dimension_numbers<[1], [0], [0], [1], [0, 0, 1, 1], [], []>} : vector<8x4xf32>, vector<4x256xf32>, vector<8x256xf32> -> vector<8x256xf32>
    %24 = arith.addf %15, %23 : vector<8x256xf32>
    %c0_22 = arith.constant 0 : index
    %c0_23 = arith.constant 0 : index
    %c16 = arith.constant 16 : index
    %25 = vector.load %arg1[%c0_22, %c0_23, %c16] : memref<1x4x290xf32, #tpu.memory_space<vmem>>, vector<1x4x256xf32>
    %26 = vector.shape_cast %25 : vector<1x4x256xf32> to vector<4x256xf32>
    %c0_24 = arith.constant 0 : index
    %c0_25 = arith.constant 0 : index
    %27 = vector.load %arg3[%c0_24, %c0_25] : memref<3x256xf32, #tpu.memory_space<vmem>>, vector<1x256xf32>
    %28 = vector.broadcast %27 : vector<1x256xf32> to vector<4x256xf32>
    %29 = arith.mulf %26, %28 : vector<4x256xf32>
    %c3 = arith.constant 3 : index
    %c0_26 = arith.constant 0 : index
    %c0_27 = arith.constant 0 : index
    %30 = vector.load %arg2[%c3, %c0_26, %c0_27] : memref<9x8x4xf32, #tpu.memory_space<vmem>>, vector<1x8x4xf32>
    %31 = vector.shape_cast %30 : vector<1x8x4xf32> to vector<8x4xf32>
    %cst_28 = arith.constant dense<0.000000e+00> : vector<8x256xf32>
    %32 = tpu.matmul %31, %29, %cst_28 {dimension_numbers = #tpu.dot_dimension_numbers<[1], [0], [0], [1], [0, 0, 1, 1], [], []>} : vector<8x4xf32>, vector<4x256xf32>, vector<8x256xf32> -> vector<8x256xf32>
    %33 = arith.addf %24, %32 : vector<8x256xf32>
    %c0_29 = arith.constant 0 : index
    %c0_30 = arith.constant 0 : index
    %c17 = arith.constant 17 : index
    %34 = vector.load %arg1[%c0_29, %c0_30, %c17] : memref<1x4x290xf32, #tpu.memory_space<vmem>>, vector<1x4x256xf32>
    %35 = vector.shape_cast %34 : vector<1x4x256xf32> to vector<4x256xf32>
    %c4 = arith.constant 4 : index
    %c0_31 = arith.constant 0 : index
    %c0_32 = arith.constant 0 : index
    %36 = vector.load %arg2[%c4, %c0_31, %c0_32] : memref<9x8x4xf32, #tpu.memory_space<vmem>>, vector<1x8x4xf32>
    %37 = vector.shape_cast %36 : vector<1x8x4xf32> to vector<8x4xf32>
    %cst_33 = arith.constant dense<0.000000e+00> : vector<8x256xf32>
    %38 = tpu.matmul %37, %35, %cst_33 {dimension_numbers = #tpu.dot_dimension_numbers<[1], [0], [0], [1], [0, 0, 1, 1], [], []>} : vector<8x4xf32>, vector<4x256xf32>, vector<8x256xf32> -> vector<8x256xf32>
    %39 = arith.addf %33, %38 : vector<8x256xf32>
    %c0_34 = arith.constant 0 : index
    %c0_35 = arith.constant 0 : index
    %c18 = arith.constant 18 : index
    %40 = vector.load %arg1[%c0_34, %c0_35, %c18] : memref<1x4x290xf32, #tpu.memory_space<vmem>>, vector<1x4x256xf32>
    %41 = vector.shape_cast %40 : vector<1x4x256xf32> to vector<4x256xf32>
    %c2_36 = arith.constant 2 : index
    %c0_37 = arith.constant 0 : index
    %42 = vector.load %arg3[%c2_36, %c0_37] : memref<3x256xf32, #tpu.memory_space<vmem>>, vector<1x256xf32>
    %43 = vector.broadcast %42 : vector<1x256xf32> to vector<4x256xf32>
    %44 = arith.mulf %41, %43 : vector<4x256xf32>
    %c5 = arith.constant 5 : index
    %c0_38 = arith.constant 0 : index
    %c0_39 = arith.constant 0 : index
    %45 = vector.load %arg2[%c5, %c0_38, %c0_39] : memref<9x8x4xf32, #tpu.memory_space<vmem>>, vector<1x8x4xf32>
    %46 = vector.shape_cast %45 : vector<1x8x4xf32> to vector<8x4xf32>
    %cst_40 = arith.constant dense<0.000000e+00> : vector<8x256xf32>
    %47 = tpu.matmul %46, %44, %cst_40 {dimension_numbers = #tpu.dot_dimension_numbers<[1], [0], [0], [1], [0, 0, 1, 1], [], []>} : vector<8x4xf32>, vector<4x256xf32>, vector<8x256xf32> -> vector<8x256xf32>
    %48 = arith.addf %39, %47 : vector<8x256xf32>
    %c0_41 = arith.constant 0 : index
    %c0_42 = arith.constant 0 : index
    %c32 = arith.constant 32 : index
    %49 = vector.load %arg1[%c0_41, %c0_42, %c32] : memref<1x4x290xf32, #tpu.memory_space<vmem>>, vector<1x4x256xf32>
    %50 = vector.shape_cast %49 : vector<1x4x256xf32> to vector<4x256xf32>
    %c0_43 = arith.constant 0 : index
    %c0_44 = arith.constant 0 : index
    %51 = vector.load %arg3[%c0_43, %c0_44] : memref<3x256xf32, #tpu.memory_space<vmem>>, vector<1x256xf32>
    %52 = vector.broadcast %51 : vector<1x256xf32> to vector<4x256xf32>
    %53 = arith.mulf %50, %52 : vector<4x256xf32>
    %c6 = arith.constant 6 : index
    %c0_45 = arith.constant 0 : index
    %c0_46 = arith.constant 0 : index
    %54 = vector.load %arg2[%c6, %c0_45, %c0_46] : memref<9x8x4xf32, #tpu.memory_space<vmem>>, vector<1x8x4xf32>
    %55 = vector.shape_cast %54 : vector<1x8x4xf32> to vector<8x4xf32>
    %cst_47 = arith.constant dense<0.000000e+00> : vector<8x256xf32>
    %56 = tpu.matmul %55, %53, %cst_47 {dimension_numbers = #tpu.dot_dimension_numbers<[1], [0], [0], [1], [0, 0, 1, 1], [], []>} : vector<8x4xf32>, vector<4x256xf32>, vector<8x256xf32> -> vector<8x256xf32>
    %57 = arith.addf %48, %56 : vector<8x256xf32>
    %c0_48 = arith.constant 0 : index
    %c0_49 = arith.constant 0 : index
    %c33 = arith.constant 33 : index
    %58 = vector.load %arg1[%c0_48, %c0_49, %c33] : memref<1x4x290xf32, #tpu.memory_space<vmem>>, vector<1x4x256xf32>
    %59 = vector.shape_cast %58 : vector<1x4x256xf32> to vector<4x256xf32>
    %c7 = arith.constant 7 : index
    %c0_50 = arith.constant 0 : index
    %c0_51 = arith.constant 0 : index
    %60 = vector.load %arg2[%c7, %c0_50, %c0_51] : memref<9x8x4xf32, #tpu.memory_space<vmem>>, vector<1x8x4xf32>
    %61 = vector.shape_cast %60 : vector<1x8x4xf32> to vector<8x4xf32>
    %cst_52 = arith.constant dense<0.000000e+00> : vector<8x256xf32>
    %62 = tpu.matmul %61, %59, %cst_52 {dimension_numbers = #tpu.dot_dimension_numbers<[1], [0], [0], [1], [0, 0, 1, 1], [], []>} : vector<8x4xf32>, vector<4x256xf32>, vector<8x256xf32> -> vector<8x256xf32>
    %63 = arith.addf %57, %62 : vector<8x256xf32>
    %c0_53 = arith.constant 0 : index
    %c0_54 = arith.constant 0 : index
    %c34 = arith.constant 34 : index
    %64 = vector.load %arg1[%c0_53, %c0_54, %c34] : memref<1x4x290xf32, #tpu.memory_space<vmem>>, vector<1x4x256xf32>
    %65 = vector.shape_cast %64 : vector<1x4x256xf32> to vector<4x256xf32>
    %c2_55 = arith.constant 2 : index
    %c0_56 = arith.constant 0 : index
    %66 = vector.load %arg3[%c2_55, %c0_56] : memref<3x256xf32, #tpu.memory_space<vmem>>, vector<1x256xf32>
    %67 = vector.broadcast %66 : vector<1x256xf32> to vector<4x256xf32>
    %68 = arith.mulf %65, %67 : vector<4x256xf32>
    %c8 = arith.constant 8 : index
    %c0_57 = arith.constant 0 : index
    %c0_58 = arith.constant 0 : index
    %69 = vector.load %arg2[%c8, %c0_57, %c0_58] : memref<9x8x4xf32, #tpu.memory_space<vmem>>, vector<1x8x4xf32>
    %70 = vector.shape_cast %69 : vector<1x8x4xf32> to vector<8x4xf32>
    %cst_59 = arith.constant dense<0.000000e+00> : vector<8x256xf32>
    %71 = tpu.matmul %70, %68, %cst_59 {dimension_numbers = #tpu.dot_dimension_numbers<[1], [0], [0], [1], [0, 0, 1, 1], [], []>} : vector<8x4xf32>, vector<4x256xf32>, vector<8x256xf32> -> vector<8x256xf32>
    %72 = arith.addf %63, %71 : vector<8x256xf32>
    %c0_60 = arith.constant 0 : index
    %c0_61 = arith.constant 0 : index
    %73 = vector.load %arg4[%c0_60, %c0_61] : memref<8x8xf32, #tpu.memory_space<vmem>>, vector<8x8xf32>
    %cst_62 = arith.constant dense<0.000000e+00> : vector<8x256xf32>
    %74 = tpu.matmul %73, %72, %cst_62 {dimension_numbers = #tpu.dot_dimension_numbers<[1], [0], [0], [1], [0, 0, 1, 1], [], []>} : vector<8x8xf32>, vector<8x256xf32>, vector<8x256xf32> -> vector<8x256xf32>
    %cst_63 = arith.constant dense<0.000000e+00> : vector<8xf32>
    %75 = vector.multi_reduction <add>, %74, %cst_63 [1] : vector<8x256xf32> to vector<8xf32>
    %76 = vector.shape_cast %75 : vector<8xf32> to vector<8x1xf32>
    %77 = vector.broadcast %76 : vector<8x1xf32> to vector<8x256xf32>
    %78 = arith.subf %72, %77 : vector<8x256xf32>
    %c0_64 = arith.constant 0 : index
    %c0_65 = arith.constant 0 : index
    %79 = vector.load %arg4[%c0_64, %c0_65] : memref<8x8xf32, #tpu.memory_space<vmem>>, vector<8x8xf32>
    %80 = arith.mulf %78, %78 : vector<8x256xf32>
    %cst_66 = arith.constant dense<0.000000e+00> : vector<8x256xf32>
    %81 = tpu.matmul %79, %80, %cst_66 {dimension_numbers = #tpu.dot_dimension_numbers<[1], [0], [0], [1], [0, 0, 1, 1], [], []>} : vector<8x8xf32>, vector<8x256xf32>, vector<8x256xf32> -> vector<8x256xf32>
    %cst_67 = arith.constant dense<0.000000e+00> : vector<8xf32>
    %82 = vector.multi_reduction <add>, %81, %cst_67 [1] : vector<8x256xf32> to vector<8xf32>
    %83 = vector.shape_cast %82 : vector<8xf32> to vector<8x1xf32>
    %cst_68 = arith.constant 9.99999974E-6 : f32
    %84 = vector.broadcast %cst_68 : f32 to vector<8x1xf32>
    %85 = arith.addf %83, %84 : vector<8x1xf32>
    %86 = math.rsqrt %85 : vector<8x1xf32>
    %87 = vector.broadcast %86 : vector<8x1xf32> to vector<8x256xf32>
    %88 = arith.mulf %78, %87 : vector<8x256xf32>
    %c0_69 = arith.constant 0 : index
    %c0_70 = arith.constant 0 : index
    %c0_71 = arith.constant 0 : index
    %89 = vector.load %arg5[%c0_69, %c0_70, %c0_71] : memref<1x8x1xf32, #tpu.memory_space<vmem>>, vector<1x8x1xf32>
    %90 = vector.shape_cast %89 : vector<1x8x1xf32> to vector<8x1xf32>
    %91 = vector.broadcast %90 : vector<8x1xf32> to vector<8x256xf32>
    %92 = arith.mulf %88, %91 : vector<8x256xf32>
    %c0_72 = arith.constant 0 : index
    %c0_73 = arith.constant 0 : index
    %c0_74 = arith.constant 0 : index
    %93 = vector.load %arg6[%c0_72, %c0_73, %c0_74] : memref<1x8x1xf32, #tpu.memory_space<vmem>>, vector<1x8x1xf32>
    %94 = vector.shape_cast %93 : vector<1x8x1xf32> to vector<8x1xf32>
    %95 = vector.broadcast %94 : vector<8x1xf32> to vector<8x256xf32>
    %96 = arith.addf %92, %95 : vector<8x256xf32>
    %cst_75 = arith.constant 0.000000e+00 : f32
    %97 = vector.broadcast %cst_75 : f32 to vector<8x256xf32>
    %98 = arith.subf %97, %96 : vector<8x256xf32>
    %99 = math.exp %98 : vector<8x256xf32>
    %cst_76 = arith.constant 1.000000e+00 : f32
    %100 = vector.broadcast %cst_76 : f32 to vector<8x256xf32>
    %101 = arith.addf %100, %99 : vector<8x256xf32>
    %cst_77 = arith.constant 1.000000e+00 : f32
    %102 = vector.broadcast %cst_77 : f32 to vector<8x256xf32>
    %103 = arith.divf %102, %101 : vector<8x256xf32>
    %104 = arith.mulf %96, %103 : vector<8x256xf32>
    %c0_78 = arith.constant 0 : index
    %c0_79 = arith.constant 0 : index
    %c0_80 = arith.constant 0 : index
    %105 = vector.load %arg7[%c0_78, %c0_79, %c0_80] : memref<1x8x256xf32, #tpu.memory_space<vmem>>, vector<1x8x256xf32>
    %106 = vector.shape_cast %105 : vector<1x8x256xf32> to vector<8x256xf32>
    %107 = vector.shape_cast %104 : vector<8x256xf32> to vector<1x8x256xf32>
    tpu.vector_store %arg7[%c0_78, %c0_79, %c0_80], %107 {strides = array<i32>} : memref<1x8x256xf32, #tpu.memory_space<vmem>>, vector<1x8x256xf32>,
    return
  }
  func.func @transform_0(%arg0: i32) -> (i32, i32, i32) {
    %c0_i32 = arith.constant 0 : i32
    %c0_i32_0 = arith.constant 0 : i32
    %c0_i32_1 = arith.constant 0 : i32
    return %arg0, %c0_i32, %c0_i32_0 : i32, i32, i32
  }
  func.func @transform_1(%arg0: i32) -> (i32, i32, i32) {
    %c0_i32 = arith.constant 0 : i32
    %c0_i32_0 = arith.constant 0 : i32
    %c0_i32_1 = arith.constant 0 : i32
    %c0_i32_2 = arith.constant 0 : i32
    return %c0_i32, %c0_i32_0, %c0_i32_1 : i32, i32, i32
  }
  func.func @transform_2(%arg0: i32) -> (i32, i32) {
    %c0_i32 = arith.constant 0 : i32
    %c0_i32_0 = arith.constant 0 : i32
    %c0_i32_1 = arith.constant 0 : i32
    return %c0_i32, %c0_i32_0 : i32, i32
  }
  func.func @transform_3(%arg0: i32) -> (i32, i32) {
    %c0_i32 = arith.constant 0 : i32
    %c0_i32_0 = arith.constant 0 : i32
    %c0_i32_1 = arith.constant 0 : i32
    return %c0_i32, %c0_i32_0 : i32, i32
  }
  func.func @transform_4(%arg0: i32) -> (i32, i32, i32) {
    %c0_i32 = arith.constant 0 : i32
    %c0_i32_0 = arith.constant 0 : i32
    %c0_i32_1 = arith.constant 0 : i32
    return %arg0, %c0_i32, %c0_i32_0 : i32, i32, i32
  }
  func.func @transform_5(%arg0: i32) -> (i32, i32, i32) {
    %c0_i32 = arith.constant 0 : i32
    %c0_i32_0 = arith.constant 0 : i32
    %c0_i32_1 = arith.constant 0 : i32
    return %arg0, %c0_i32, %c0_i32_0 : i32, i32, i32
  }
  func.func @transform_6(%arg0: i32) -> (i32, i32, i32) {
    %c0_i32 = arith.constant 0 : i32
    %c0_i32_0 = arith.constant 0 : i32
    %c0_i32_1 = arith.constant 0 : i32
    return %arg0, %c0_i32, %c0_i32_0 : i32, i32, i32
  }
}

</mosaic_0001>

<llo_original>
// kernel: baseblock2d_forward.1
$region0: #{baseblock2d_forward.1}
  #allocation0 [shape = 'u32[]', space=smem, size = 0x4, offset = 0x4, fixed_abs, tag = 'smem constant byte address 0x4 - core index']
  #allocation1 [shape = 'u32[144,128]{1,0:T(1,128)}', space=vmem, size = 0x12000, scoped, tag = 'internal scratch']
  %s0 = inlined_call_operand.vmem [shape: f32[2,4,290], index: 0, kind: input, shape index: {}]
  %s1 = inlined_call_operand.vmem [shape: f32[9,8,4], index: 1, kind: input, shape index: {}]
  %s2 = inlined_call_operand.vmem [shape: f32[3,256], index: 2, kind: input, shape index: {}]
  %s3 = inlined_call_operand.vmem [shape: f32[8,8], index: 3, kind: input, shape index: {}]
  %s4 = inlined_call_operand.vmem [shape: f32[2,8,1], index: 4, kind: input, shape index: {}]
  %s5 = inlined_call_operand.vmem [shape: f32[2,8,1], index: 5, kind: input, shape index: {}]
  %s6 = inlined_call_operand.vmem [shape: f32[2,8,256], index: 6, kind: output, shape index: {}]
  %s7 = sld [smem:[#allocation0]]
  $region57: #{baseblock2d_forward.1} parent=0
    _
  %s9 = ssub.s32 1, %s7
  %s10 = scalar_select 0, %s9, %s7
  loop: start=0, step=1, limit=4
  $region2: #{baseblock2d_forward.1} parent=0 // loop_pre_header
    _
  $region3: #{baseblock2d_forward.1} parent=0 // loop_header
    %s12 = sphi 0, %s16
    %p13 = scmp.ge.s32.totalorder %s12, 4
    %s22 = sphi 0, %s24
    %s25 = sphi 0, %s22
    %s26 = sphi 0, %s25
    %s42 = sphi 0, %s26
    %s46 = sphi 0, %s46
    %s48 = sphi 0, %s46
    %s49 = sphi 0, %s48
    %s63 = sphi 0, %s49
    %s67 = sphi 0, %s67
    %s69 = sphi 0, %s67
    %s70 = sphi 0, %s69
    %s84 = sphi 0, %s70
    %s88 = sphi 0, %s88
    %s90 = sphi 0, %s88
    %s91 = sphi 0, %s90
    %s105 = sphi 0, %s91
    %s111 = sphi 0, %s113
    %s114 = sphi 0, %s111
    %s115 = sphi 0, %s114
    %s131 = sphi 0, %s115
    %s137 = sphi 0, %s139
    %s140 = sphi 0, %s137
    %s141 = sphi 0, %s140
    %s157 = sphi 0, %s141
    %s163 = sphi 0, %s165
    %s166 = sphi 0, %s163
    %s167 = sphi 0, %s166
    %s183 = sphi 0, %s167
  $region4: #{baseblock2d_forward.1} parent=0 // loop_header_branch
    %15 = sbr.rel (%p13) target = $region8
  $region5: #{baseblock2d_forward.1} parent=0 // loop_body
    %s17 = ssub.s32 %s12, 1
    %s18 = ssub.s32 %s12, 2
    %s19 = sadd.s32 %s12, 1
    %s20 = ssub.s32 %s12, %s19
    %p21 = scmp.eq.s32.totalorder %s20, 0
    %s23 = sadd.s32 %s22, 1
    %s24 = scalar_select %p21, %s22, %s23
    %p27 = pneg %p21
    %p28 = scmp.eq.s32.totalorder %s12, 1
    %p29 = por %p27, %p28
    %p30 = scmp.ne.s32.totalorder %s22, %s25
    %p31 = scmp.eq.s32.totalorder %s12, 0
    %p32 = por %p30, %p31
    %p33 = scmp.ne.s32.totalorder %s22, %s25
    %p34 = scmp.eq.s32.totalorder %s17, 1
    %p35 = por %p33, %p34
    %p36 = scmp.ne.s32.totalorder %s25, %s26
    %p37 = scmp.eq.s32.totalorder %s17, 0
    %p38 = por %p36, %p37
    %p39 = scmp.ne.s32.totalorder %s25, %s26
    %p40 = scmp.eq.s32.totalorder %s18, 1
    %p41 = por %p39, %p40
    %p43 = scmp.ne.s32.totalorder %s26, %s42
    %p44 = scmp.eq.s32.totalorder %s18, 0
    %p45 = por %p43, %p44
    %s47 = sadd.s32 %s46, 1
    %p50 = scmp.eq.s32.totalorder %s12, 1
    %p51 = scmp.ne.s32.totalorder %s46, %s48
    %p52 = scmp.eq.s32.totalorder %s12, 0
    %p53 = por %p51, %p52
    %p54 = scmp.ne.s32.totalorder %s46, %s48
    %p55 = scmp.eq.s32.totalorder %s17, 1
    %p56 = por %p54, %p55
    %p57 = scmp.ne.s32.totalorder %s48, %s49
    %p58 = scmp.eq.s32.totalorder %s17, 0
    %p59 = por %p57, %p58
    %p60 = scmp.ne.s32.totalorder %s48, %s49
    %p61 = scmp.eq.s32.totalorder %s18, 1
    %p62 = por %p60, %p61
    %p64 = scmp.ne.s32.totalorder %s49, %s63
    %p65 = scmp.eq.s32.totalorder %s18, 0
    %p66 = por %p64, %p65
    %s68 = sadd.s32 %s67, 1
    %p71 = scmp.eq.s32.totalorder %s12, 1
    %p72 = scmp.ne.s32.totalorder %s67, %s69
    %p73 = scmp.eq.s32.totalorder %s12, 0
    %p74 = por %p72, %p73
    %p75 = scmp.ne.s32.totalorder %s67, %s69
    %p76 = scmp.eq.s32.totalorder %s17, 1
    %p77 = por %p75, %p76
    %p78 = scmp.ne.s32.totalorder %s69, %s70
    %p79 = scmp.eq.s32.totalorder %s17, 0
    %p80 = por %p78, %p79
    %p81 = scmp.ne.s32.totalorder %s69, %s70
    %p82 = scmp.eq.s32.totalorder %s18, 1
    %p83 = por %p81, %p82
    %p85 = scmp.ne.s32.totalorder %s70, %s84
    %p86 = scmp.eq.s32.totalorder %s18, 0
    %p87 = por %p85, %p86
    %s89 = sadd.s32 %s88, 1
    %p92 = scmp.eq.s32.totalorder %s12, 1
    %p93 = scmp.ne.s32.totalorder %s88, %s90
    %p94 = scmp.eq.s32.totalorder %s12, 0
    %p95 = por %p93, %p94
    %p96 = scmp.ne.s32.totalorder %s88, %s90
    %p97 = scmp.eq.s32.totalorder %s17, 1
    %p98 = por %p96, %p97
    %p99 = scmp.ne.s32.totalorder %s90, %s91
    %p100 = scmp.eq.s32.totalorder %s17, 0
    %p101 = por %p99, %p100
    %p102 = scmp.ne.s32.totalorder %s90, %s91
    %p103 = scmp.eq.s32.totalorder %s18, 1
    %p104 = por %p102, %p103
    %p106 = scmp.ne.s32.totalorder %s91, %s105
    %p107 = scmp.eq.s32.totalorder %s18, 0
    %p108 = por %p106, %p107
    %s109 = ssub.s32 %s12, %s19
    %p110 = scmp.eq.s32.totalorder %s109, 0
    %s112 = sadd.s32 %s111, 1
    %s113 = scalar_select %p110, %s111, %s112
    %p116 = pneg %p110
    %p117 = scmp.eq.s32.totalorder %s12, 1
    %p118 = por %p116, %p117
    %p119 = scmp.ne.s32.totalorder %s111, %s114
    %p120 = scmp.eq.s32.totalorder %s12, 0
    %p121 = por %p119, %p120
    %p122 = scmp.ne.s32.totalorder %s111, %s114
    %p123 = scmp.eq.s32.totalorder %s17, 1
    %p124 = por %p122, %p123
    %p125 = scmp.ne.s32.totalorder %s114, %s115
    %p126 = scmp.eq.s32.totalorder %s17, 0
    %p127 = por %p125, %p126
    %p128 = scmp.ne.s32.totalorder %s114, %s115
    %p129 = scmp.eq.s32.totalorder %s18, 1
    %p130 = por %p128, %p129
    %p132 = scmp.ne.s32.totalorder %s115, %s131
    %p133 = scmp.eq.s32.totalorder %s18, 0
    %p134 = por %p132, %p133
    %s135 = ssub.s32 %s12, %s19
    %p136 = scmp.eq.s32.totalorder %s135, 0
    %s138 = sadd.s32 %s137, 1
    %s139 = scalar_select %p136, %s137, %s138
    %p142 = pneg %p136
    %p143 = scmp.eq.s32.totalorder %s12, 1
    %p144 = por %p142, %p143
    %p145 = scmp.ne.s32.totalorder %s137, %s140
    %p146 = scmp.eq.s32.totalorder %s12, 0
    %p147 = por %p145, %p146
    %p148 = scmp.ne.s32.totalorder %s137, %s140
    %p149 = scmp.eq.s32.totalorder %s17, 1
    %p150 = por %p148, %p149
    %p151 = scmp.ne.s32.totalorder %s140, %s141
    %p152 = scmp.eq.s32.totalorder %s17, 0
    %p153 = por %p151, %p152
    %p154 = scmp.ne.s32.totalorder %s140, %s141
    %p155 = scmp.eq.s32.totalorder %s18, 1
    %p156 = por %p154, %p155
    %p158 = scmp.ne.s32.totalorder %s141, %s157
    %p159 = scmp.eq.s32.totalorder %s18, 0
    %p160 = por %p158, %p159
    %s161 = ssub.s32 %s12, %s19
    %p162 = scmp.eq.s32.totalorder %s161, 0
    %s164 = sadd.s32 %s163, 1
    %s165 = scalar_select %p162, %s163, %s164
    %p168 = pneg %p162
    %p169 = scmp.eq.s32.totalorder %s12, 1
    %p170 = por %p168, %p169
    %p171 = scmp.ne.s32.totalorder %s163, %s166
    %p172 = scmp.eq.s32.totalorder %s12, 0
    %p173 = por %p171, %p172
    %p174 = scmp.ne.s32.totalorder %s163, %s166
    %p175 = scmp.eq.s32.totalorder %s17, 1
    %p176 = por %p174, %p175
    %p177 = scmp.ne.s32.totalorder %s166, %s167
    %p178 = scmp.eq.s32.totalorder %s17, 0
    %p179 = por %p177, %p178
    %p180 = scmp.ne.s32.totalorder %s166, %s167
    %p181 = scmp.eq.s32.totalorder %s18, 1
    %p182 = por %p180, %p181
    %p184 = scmp.ne.s32.totalorder %s167, %s183
    %p185 = scmp.eq.s32.totalorder %s18, 0
    %p186 = por %p184, %p185
    %p187 = scmp.le.s32.totalorder 1, %s12
    %p188 = scmp.lt.s32.totalorder %s12, 3
    %p189 = pnand %p187, %p188
    %p190 = pneg %p189
    // Predicated region
    $region9: #{baseblock2d_forward.1} parent=5 // pred_check
      _
    $region10: #{baseblock2d_forward.1} parent=5 // pred_check_branch
      %192 = sbr.rel (%p189) target = $region12
    $region11: #{baseblock2d_forward.1} parent=5 // pred_region
      %s193 = ssub.s32 %s12, 1
      // Predicated region
      $region13: #{baseblock2d_forward.1} parent=11 // pred_check
        %p194 = pneg %p59
      $region14: #{baseblock2d_forward.1} parent=11 // pred_check_branch
        %196 = sbr.rel (%p194) target = $region16
      $region15: #{baseblock2d_forward.1} parent=11 // pred_region
        _
      $region16: #{baseblock2d_forward.1} parent=11 // pred_fallthru
        _
      // Predicated region
      $region17: #{baseblock2d_forward.1} parent=11 // pred_check
        %p197 = pneg %p80
      $region18: #{baseblock2d_forward.1} parent=11 // pred_check_branch
        %199 = sbr.rel (%p197) target = $region20
      $region19: #{baseblock2d_forward.1} parent=11 // pred_region
        _
      $region20: #{baseblock2d_forward.1} parent=11 // pred_fallthru
        _
      // Predicated region
      $region21: #{baseblock2d_forward.1} parent=11 // pred_check
        %p200 = pneg %p101
      $region22: #{baseblock2d_forward.1} parent=11 // pred_check_branch
        %202 = sbr.rel (%p200) target = $region24
      $region23: #{baseblock2d_forward.1} parent=11 // pred_region
        _
      $region24: #{baseblock2d_forward.1} parent=11 // pred_fallthru
        _
    $region12: #{baseblock2d_forward.1} parent=5 // pred_fallthru
      _
    %p203 = scmp.lt.s32.totalorder %s12, 2
    // Predicated region
    $region25: #{baseblock2d_forward.1} parent=5 // pred_check
      %p204 = pneg %p203
    $region26: #{baseblock2d_forward.1} parent=5 // pred_check_branch
      %206 = sbr.rel (%p204) target = $region28
    $region27: #{baseblock2d_forward.1} parent=5 // pred_region
      // Predicated region
      $region29: #{baseblock2d_forward.1} parent=27 // pred_check
        %p207 = pneg %p32
      $region30: #{baseblock2d_forward.1} parent=27 // pred_check_branch
        %209 = sbr.rel (%p207) target = $region32
      $region31: #{baseblock2d_forward.1} parent=27 // pred_region
        %p210 = scmp.lt.s32.totalorder %s12, 1
        %s211 = scalar_select %p210, %s12, 1
        %s212 = smul.addr %s211, 3
        %s213 = smul.addr %s212, 4
        %s214 = scalar_lea.vmem %s0, %s213
      $region32: #{baseblock2d_forward.1} parent=27 // pred_fallthru
        _
      // Predicated region
      $region33: #{baseblock2d_forward.1} parent=27 // pred_check
        %p215 = pneg %p121
      $region34: #{baseblock2d_forward.1} parent=27 // pred_check_branch
        %217 = sbr.rel (%p215) target = $region36
      $region35: #{baseblock2d_forward.1} parent=27 // pred_region
        %p218 = scmp.lt.s32.totalorder %s12, 1
        %s219 = scalar_select %p218, %s12, 1
        %s220 = smul.addr %s219, 8
        %s221 = scalar_lea.vmem %s4, %s220
      $region36: #{baseblock2d_forward.1} parent=27 // pred_fallthru
        _
      // Predicated region
      $region37: #{baseblock2d_forward.1} parent=27 // pred_check
        %p222 = pneg %p147
      $region38: #{baseblock2d_forward.1} parent=27 // pred_check_branch
        %224 = sbr.rel (%p222) target = $region40
      $region39: #{baseblock2d_forward.1} parent=27 // pred_region
        %p225 = scmp.lt.s32.totalorder %s12, 1
        %s226 = scalar_select %p225, %s12, 1
        %s227 = smul.addr %s226, 8
        %s228 = scalar_lea.vmem %s5, %s227
      $region40: #{baseblock2d_forward.1} parent=27 // pred_fallthru
        _
    $region28: #{baseblock2d_forward.1} parent=5 // pred_fallthru
      _
    %p229 = scmp.le.s32.totalorder 1, %s12
    %p230 = scmp.lt.s32.totalorder %s12, 3
    %p231 = pnand %p229, %p230
    %p232 = pneg %p231
    // Predicated region
    $region41: #{baseblock2d_forward.1} parent=5 // pred_check
      _
    $region42: #{baseblock2d_forward.1} parent=5 // pred_check_branch
      %234 = sbr.rel (%p231) target = $region44
    $region43: #{baseblock2d_forward.1} parent=5 // pred_region
      %s235 = ssub.s32 %s12, 1
      %p236 = scmp.lt.s32.totalorder %s17, 1
      %s237 = scalar_select %p236, %s17, 1
      %s238 = smul.addr %s237, 3
      %s239 = smul.addr %s238, 4
      %s240 = scalar_lea.vmem %s0, %s239
      %p241 = pneg %p38
      %p242 = pneg %p35
      %p243 = pneg %p59
      %p244 = pneg %p56
      %p245 = pneg %p80
      %p246 = pneg %p77
      %p247 = pneg %p101
      %p248 = pneg %p98
      %p249 = scmp.lt.s32.totalorder %s17, 1
      %s250 = scalar_select %p249, %s17, 1
      %s251 = smul.addr %s250, 8
      %s252 = scalar_lea.vmem %s4, %s251
      %p253 = pneg %p127
      %p254 = pneg %p124
      %p255 = scmp.lt.s32.totalorder %s17, 1
      %s256 = scalar_select %p255, %s17, 1
      %s257 = smul.addr %s256, 8
      %s258 = scalar_lea.vmem %s5, %s257
      %p259 = pneg %p153
      %p260 = pneg %p150
      %p261 = pneg %p179
      %p262 = pneg %p176
      %p263 = scmp.lt.s32.totalorder %s17, 1
      %s264 = scalar_select %p263, %s17, 1
      %s265 = smul.addr %s264, 2
      %s266 = smul.addr %s265, 8
      %s267 = scalar_lea.vmem %s6, %s266
      %p268 = scmp.lt.s32.totalorder %s17, 1
      %s269 = scalar_select %p268, %s17, 1
      %s270 = smul.addr %s269, 3
      %s271 = smul.addr %s270, 4
      %s272 = scalar_lea.vmem %s0, %s271
      %p273 = scmp.lt.s32.totalorder %s17, 1
      %s274 = scalar_select %p273, %s17, 1
      %s275 = smul.addr %s274, 8
      %s276 = scalar_lea.vmem %s4, %s275
      %p277 = scmp.lt.s32.totalorder %s17, 1
      %s278 = scalar_select %p277, %s17, 1
      %s279 = smul.addr %s278, 8
      %s280 = scalar_lea.vmem %s5, %s279
      %p281 = scmp.lt.s32.totalorder %s17, 1
      %s282 = scalar_select %p281, %s17, 1
      %s283 = smul.addr %s282, 2
      %s284 = smul.addr %s283, 8
      %s285 = scalar_lea.vmem %s6, %s284
      %v286 = vld [vmem:[%s272] sm:$0xff]
      %v287 = vld [vmem:[%s2] ss:$4 sm:$0x3]
      %v289 = vlaneseq
      %v290 = vshrl.u32 %v289, 7
      %v291 = vsub.s32 0, %v290
      %v292 = vrot.slane %v287, %v291
      %v293 = vlaneseq
      %v294 = vshrl.u32 %v293, 7
      %v295 = vsub.s32 1, %v294
      %v296 = vrot.slane %v287, %v295
      %v297 = vcombine.low %v292, %v296
      %v299 = vmul.f32 %v286, %v297
      %v300 = vld [vmem:[%s1] sm:$0xff]
      %v301 = vld [vmem:[%s272 + $0x8] sm:$0xf]
      %s302 = scalar_lea.vmem %s1, 8
      %v303 = vld [vmem:[%s302] sm:$0xff]
      %v306 = vcombine.high %v286, %v286
      %307 = vrot.lane.b32.xlu0 %v286, 127
      %v308 = vpop.permute.xlu0 %307
      %309 = vrot.lane.b32.xlu0 %v306, 127
      %v310 = vpop.permute.xlu0 %309
      %311 = vrot.lane.b32.xlu0 %v301, 127
      %v312 = vpop.permute.xlu0 %311
      %vm313 = vcmask 1039360
      %v314 = vsel %vm313, %v308, %v310
      %v315 = vsel %vm313, %v310, %v312
      %vm316 = vcmask 31744
      %v318 = vsel %vm316, %v303, 0
      %vm320 = vcmask 1043456
      %v321 = vsel %vm320, %v314, 0
      %v323 = vsel %vm320, %v315, 0
      %325 = vmatprep.subr.mxu0 %v323
      %326 = vmatpush1.msra.mxu0 %v321
      %327 = vmatprep.subr.mxu0 0.0
      %328 = vmatpush1.msra.mxu0 0.0
      %329 = vmatprep.subr.mxu0 0.0
      %330 = vmatpush1.msra.mxu0 0.0
      %331 = vmatprep.subr.mxu0 0.0
      %332 = vmatpush1.msra.mxu0 0.0
      %333 = vmatprep.subr.mxu0 0.0
      %334 = vmatpush1.msra.mxu0 0.0
      %335 = vmatprep.subr.mxu0 0.0
      %336 = vmatpush1.msra.mxu0 0.0
      %337 = vmatprep.subr.mxu0 0.0
      %338 = vmatpush1.msra.mxu0 0.0
      %339 = vmatprep.subr.mxu0 0.0
      %340 = vmatpush1.msra.mxu0 0.0
      %341 = vmatprep.subr.mxu0 0.0
      %342 = vmatpush1.msra.mxu0 0.0
      %343 = vmatprep.subr.mxu0 0.0
      %344 = vmatpush1.msra.mxu0 0.0
      %345 = vmatprep.subr.mxu0 0.0
      %346 = vmatpush1.msra.mxu0 0.0
      %347 = vmatprep.subr.mxu0 0.0
      %348 = vmatpush1.msra.mxu0 0.0
      %349 = vmatprep.subr.mxu0 0.0
      %350 = vmatpush1.msra.mxu0 0.0
      %351 = vmatprep.subr.mxu0 0.0
      %352 = vmatpush1.msra.mxu0 0.0
      %353 = vmatprep.subr.mxu0 0.0
      %354 = vmatpush1.msra.mxu0 0.0
      %355 = vmatprep.subr.mxu0 0.0
      %356 = vmatpush1.msra.mxu0 0.0
      %357 = vmatprep.subr.mxu0 0.0
      %358 = vmatpush1.msra.mxu0 0.0
      %359 = vmatprep.subr.mxu0 0.0
      %360 = vmatpush1.msra.mxu0 0.0
      %361 = vmatprep.subr.mxu0 0.0
      %362 = vmatpush1.msra.mxu0 0.0
      %363 = vmatprep.subr.mxu0 0.0
      %364 = vmatpush1.msra.mxu0 0.0
      %365 = vmatprep.subr.mxu0 0.0
      %366 = vmatpush1.msra.mxu0 0.0
      %367 = vmatprep.subr.mxu0 0.0
      %368 = vmatpush1.msra.mxu0 0.0
      %369 = vmatprep.subr.mxu0 0.0
      %370 = vmatpush1.msra.mxu0 0.0
      %371 = vmatprep.subr.mxu0 0.0
      %372 = vmatpush1.msra.mxu0 0.0
      %373 = vmatprep.subr.mxu0 0.0
      %374 = vmatpush1.msra.mxu0 0.0
      %375 = vmatprep.subr.mxu0 0.0
      %376 = vmatpush1.msra.mxu0 0.0
      %377 = vmatprep.subr.mxu0 0.0
      %378 = vmatpush1.msra.mxu0 0.0
      %379 = vmatprep.subr.mxu0 0.0
      %380 = vmatpush1.msra.mxu0 0.0
      %381 = vmatprep.subr.mxu0 0.0
      %382 = vmatpush1.msra.mxu0 0.0
      %383 = vmatprep.subr.mxu0 0.0
      %384 = vmatpush1.msra.mxu0 0.0
      %385 = vmatprep.subr.mxu0 0.0
      %386 = vmatpush1.msra.mxu0 0.0
      %387 = vmatprep.subr.mxu0 0.0
      %388 = vmatpush1.msra.mxu0 0.0
      %389 = vmatprep.mubr.f32.mxu0 0.0
      %390 = vmatmul.mubr.f32.gmra.mrb[0].mxu0 %v318
      %v391 = vpop.f32.mrb[0].mxu0
      %v392 = vadd.f32 0.0, %v391
      %v393 = vpop.f32.mrb[0].mxu0
      %v394 = vadd.f32 0.0, %v393
      %395 = vdwg.mxu0
      %v397 = vcombine.high %v299, %v299
      %v399 = vsel %vm316, %v300, 0
      %v401 = vsel %vm320, %v299, 0
      %v403 = vsel %vm320, %v397, 0
      %405 = vmatprep.subr.mxu0 %v403
      %406 = vmatpush1.msra.mxu0 %v401
      %407 = vmatprep.subr.mxu0 0.0
      %408 = vmatpush1.msra.mxu0 0.0
      %409 = vmatprep.subr.mxu0 0.0
      %410 = vmatpush1.msra.mxu0 0.0
      %411 = vmatprep.subr.mxu0 0.0
      %412 = vmatpush1.msra.mxu0 0.0
      %413 = vmatprep.subr.mxu0 0.0
      %414 = vmatpush1.msra.mxu0 0.0
      %415 = vmatprep.subr.mxu0 0.0
      %416 = vmatpush1.msra.mxu0 0.0
      %417 = vmatprep.subr.mxu0 0.0
      %418 = vmatpush1.msra.mxu0 0.0
      %419 = vmatprep.subr.mxu0 0.0
      %420 = vmatpush1.msra.mxu0 0.0
      %421 = vmatprep.subr.mxu0 0.0
      %422 = vmatpush1.msra.mxu0 0.0
      %423 = vmatprep.subr.mxu0 0.0
      %424 = vmatpush1.msra.mxu0 0.0
      %425 = vmatprep.subr.mxu0 0.0
      %426 = vmatpush1.msra.mxu0 0.0
      %427 = vmatprep.subr.mxu0 0.0
      %428 = vmatpush1.msra.mxu0 0.0
      %429 = vmatprep.subr.mxu0 0.0
      %430 = vmatpush1.msra.mxu0 0.0
      %431 = vmatprep.subr.mxu0 0.0
      %432 = vmatpush1.msra.mxu0 0.0
      %433 = vmatprep.subr.mxu0 0.0
      %434 = vmatpush1.msra.mxu0 0.0
      %435 = vmatprep.subr.mxu0 0.0
      %436 = vmatpush1.msra.mxu0 0.0
      %437 = vmatprep.subr.mxu0 0.0
      %438 = vmatpush1.msra.mxu0 0.0
      %439 = vmatprep.subr.mxu0 0.0
      %440 = vmatpush1.msra.mxu0 0.0
      %441 = vmatprep.subr.mxu0 0.0
      %442 = vmatpush1.msra.mxu0 0.0
      %443 = vmatprep.subr.mxu0 0.0
      %444 = vmatpush1.msra.mxu0 0.0
      %445 = vmatprep.subr.mxu0 0.0
      %446 = vmatpush1.msra.mxu0 0.0
      %447 = vmatprep.subr.mxu0 0.0
      %448 = vmatpush1.msra.mxu0 0.0
      %449 = vmatprep.subr.mxu0 0.0
      %450 = vmatpush1.msra.mxu0 0.0
      %451 = vmatprep.subr.mxu0 0.0
      %452 = vmatpush1.msra.mxu0 0.0
      %453 = vmatprep.subr.mxu0 0.0
      %454 = vmatpush1.msra.mxu0 0.0
      %455 = vmatprep.subr.mxu0 0.0
      %456 = vmatpush1.msra.mxu0 0.0
      %457 = vmatprep.subr.mxu0 0.0
      %458 = vmatpush1.msra.mxu0 0.0
      %459 = vmatprep.subr.mxu0 0.0
      %460 = vmatpush1.msra.mxu0 0.0
      %461 = vmatprep.subr.mxu0 0.0
      %462 = vmatpush1.msra.mxu0 0.0
      %463 = vmatprep.subr.mxu0 0.0
      %464 = vmatpush1.msra.mxu0 0.0
      %465 = vmatprep.subr.mxu0 0.0
      %466 = vmatpush1.msra.mxu0 0.0
      %467 = vmatprep.subr.mxu0 0.0
      %468 = vmatpush1.msra.mxu0 0.0
      %469 = vmatprep.mubr.f32.mxu0 0.0
      %470 = vmatmul.mubr.f32.gmra.mrb[0].mxu0 %v399
      %v471 = vpop.f32.mrb[0].mxu0
      %v472 = vadd.f32 %v392, %v471
      %v473 = vpop.f32.mrb[0].mxu0
      %v474 = vadd.f32 %v394, %v473
      %475 = vdwg.mxu0
      %v476 = vld [vmem:[%s272] sm:$0xff]
      %v477 = vld [vmem:[%s272 + $0x8] sm:$0xf]
      %s478 = scalar_lea.vmem %s2, 2
      %v479 = vld [vmem:[%s478] ss:$4 sm:$0x3]
      %v481 = vlaneseq
      %v482 = vshrl.u32 %v481, 7
      %v483 = vsub.s32 0, %v482
      %v484 = vrot.slane %v479, %v483
      %v485 = vlaneseq
      %v486 = vshrl.u32 %v485, 7
      %v487 = vsub.s32 1, %v486
      %v488 = vrot.slane %v479, %v487
      %v489 = vcombine.low %v484, %v488
      %490 = vrot.lane.b32.xlu0 %v489, 2
      %v491 = vpop.permute.xlu0 %490
      %v492 = vrot.slane %v491, 4
      %vm493 = vcmask 15360
      %v494 = vsel %vm493, %v492, %v491
      %v497 = vmul.f32 %v476, %v494
      %v498 = vmul.f32 %v477, %v492
      %s499 = scalar_lea.vmem %s1, 16
      %v500 = vld [vmem:[%s499] sm:$0xff]
      %v503 = vcombine.high %v497, %v497
      %504 = vrot.lane.b32.xlu0 %v497, 126
      %v505 = vpop.permute.xlu0 %504
      %506 = vrot.lane.b32.xlu0 %v503, 126
      %v507 = vpop.permute.xlu0 %506
      %508 = vrot.lane.b32.xlu0 %v498, 126
      %v509 = vpop.permute.xlu0 %508
      %vm510 = vcmask 1031168
      %v511 = vsel %vm510, %v505, %v507
      %v512 = vsel %vm510, %v507, %v509
      %v514 = vsel %vm316, %v500, 0
      %v516 = vsel %vm320, %v511, 0
      %v518 = vsel %vm320, %v512, 0
      %520 = vmatprep.subr.mxu0 %v518
      %521 = vmatpush1.msra.mxu0 %v516
      %522 = vmatprep.subr.mxu0 0.0
      %523 = vmatpush1.msra.mxu0 0.0
      %524 = vmatprep.subr.mxu0 0.0
      %525 = vmatpush1.msra.mxu0 0.0
      %526 = vmatprep.subr.mxu0 0.0
      %527 = vmatpush1.msra.mxu0 0.0
      %528 = vmatprep.subr.mxu0 0.0
      %529 = vmatpush1.msra.mxu0 0.0
      %530 = vmatprep.subr.mxu0 0.0
      %531 = vmatpush1.msra.mxu0 0.0
      %532 = vmatprep.subr.mxu0 0.0
      %533 = vmatpush1.msra.mxu0 0.0
      %534 = vmatprep.subr.mxu0 0.0
      %535 = vmatpush1.msra.mxu0 0.0
      %536 = vmatprep.subr.mxu0 0.0
      %537 = vmatpush1.msra.mxu0 0.0
      %538 = vmatprep.subr.mxu0 0.0
      %539 = vmatpush1.msra.mxu0 0.0
      %540 = vmatprep.subr.mxu0 0.0
      %541 = vmatpush1.msra.mxu0 0.0
      %542 = vmatprep.subr.mxu0 0.0
      %543 = vmatpush1.msra.mxu0 0.0
      %544 = vmatprep.subr.mxu0 0.0
      %545 = vmatpush1.msra.mxu0 0.0
      %546 = vmatprep.subr.mxu0 0.0
      %547 = vmatpush1.msra.mxu0 0.0
      %548 = vmatprep.subr.mxu0 0.0
      %549 = vmatpush1.msra.mxu0 0.0
      %550 = vmatprep.subr.mxu0 0.0
      %551 = vmatpush1.msra.mxu0 0.0
      %552 = vmatprep.subr.mxu0 0.0
      %553 = vmatpush1.msra.mxu0 0.0
      %554 = vmatprep.subr.mxu0 0.0
      %555 = vmatpush1.msra.mxu0 0.0
      %556 = vmatprep.subr.mxu0 0.0
      %557 = vmatpush1.msra.mxu0 0.0
      %558 = vmatprep.subr.mxu0 0.0
      %559 = vmatpush1.msra.mxu0 0.0
      %560 = vmatprep.subr.mxu0 0.0
      %561 = vmatpush1.msra.mxu0 0.0
      %562 = vmatprep.subr.mxu0 0.0
      %563 = vmatpush1.msra.mxu0 0.0
      %564 = vmatprep.subr.mxu0 0.0
      %565 = vmatpush1.msra.mxu0 0.0
      %566 = vmatprep.subr.mxu0 0.0
      %567 = vmatpush1.msra.mxu0 0.0
      %568 = vmatprep.subr.mxu0 0.0
      %569 = vmatpush1.msra.mxu0 0.0
      %570 = vmatprep.subr.mxu0 0.0
      %571 = vmatpush1.msra.mxu0 0.0
      %572 = vmatprep.subr.mxu0 0.0
      %573 = vmatpush1.msra.mxu0 0.0
      %574 = vmatprep.subr.mxu0 0.0
      %575 = vmatpush1.msra.mxu0 0.0
      %576 = vmatprep.subr.mxu0 0.0
      %577 = vmatpush1.msra.mxu0 0.0
      %578 = vmatprep.subr.mxu0 0.0
      %579 = vmatpush1.msra.mxu0 0.0
      %580 = vmatprep.subr.mxu0 0.0
      %581 = vmatpush1.msra.mxu0 0.0
      %582 = vmatprep.subr.mxu0 0.0
      %583 = vmatpush1.msra.mxu0 0.0
      %584 = vmatprep.mubr.f32.mxu0 0.0
      %585 = vmatmul.mubr.f32.gmra.mrb[0].mxu0 %v514
      %v586 = vpop.f32.mrb[0].mxu0
      %v587 = vadd.f32 0.0, %v586
      %v588 = vpop.f32.mrb[0].mxu0
      %v589 = vadd.f32 0.0, %v588
      %590 = vdwg.mxu0
      %v591 = vadd.f32 %v472, %v587
      %v592 = vadd.f32 %v474, %v589
      %v593 = vld [vmem:[%s272] sm:$0xff]
      %v594 = vld [vmem:[%s272 + $0x8] sm:$0xf]
      %595 = vrot.lane.b32.xlu0 %v297, 16
      %v596 = vpop.permute.xlu0 %595
      %v597 = vrot.slane %v596, 4
      %vm598 = vcmask 130048
      %v599 = vsel %vm598, %v597, %v596
      %v602 = vmul.f32 %v593, %v599
      %v603 = vmul.f32 %v594, %v597
      %s604 = scalar_lea.vmem %s1, 24
      %v605 = vld [vmem:[%s604] sm:$0xff]
      %v608 = vcombine.high %v602, %v602
      %609 = vrot.lane.b32.xlu0 %v602, 112
      %v610 = vpop.permute.xlu0 %609
      %611 = vrot.lane.b32.xlu0 %v608, 112
      %v612 = vpop.permute.xlu0 %611
      %613 = vrot.lane.b32.xlu0 %v603, 112
      %v614 = vpop.permute.xlu0 %613
      %vm615 = vcmask 916480
      %v616 = vsel %vm615, %v610, %v612
      %v617 = vsel %vm615, %v612, %v614
      %v619 = vsel %vm316, %v605, 0
      %v621 = vsel %vm320, %v616, 0
      %v623 = vsel %vm320, %v617, 0
      %625 = vmatprep.subr.mxu0 %v623
      %626 = vmatpush1.msra.mxu0 %v621
      %627 = vmatprep.subr.mxu0 0.0
      %628 = vmatpush1.msra.mxu0 0.0
      %629 = vmatprep.subr.mxu0 0.0
      %630 = vmatpush1.msra.mxu0 0.0
      %631 = vmatprep.subr.mxu0 0.0
      %632 = vmatpush1.msra.mxu0 0.0
      %633 = vmatprep.subr.mxu0 0.0
      %634 = vmatpush1.msra.mxu0 0.0
      %635 = vmatprep.subr.mxu0 0.0
      %636 = vmatpush1.msra.mxu0 0.0
      %637 = vmatprep.subr.mxu0 0.0
      %638 = vmatpush1.msra.mxu0 0.0
      %639 = vmatprep.subr.mxu0 0.0
      %640 = vmatpush1.msra.mxu0 0.0
      %641 = vmatprep.subr.mxu0 0.0
      %642 = vmatpush1.msra.mxu0 0.0
      %643 = vmatprep.subr.mxu0 0.0
      %644 = vmatpush1.msra.mxu0 0.0
      %645 = vmatprep.subr.mxu0 0.0
      %646 = vmatpush1.msra.mxu0 0.0
      %647 = vmatprep.subr.mxu0 0.0
      %648 = vmatpush1.msra.mxu0 0.0
      %649 = vmatprep.subr.mxu0 0.0
      %650 = vmatpush1.msra.mxu0 0.0
      %651 = vmatprep.subr.mxu0 0.0
      %652 = vmatpush1.msra.mxu0 0.0
      %653 = vmatprep.subr.mxu0 0.0
      %654 = vmatpush1.msra.mxu0 0.0
      %655 = vmatprep.subr.mxu0 0.0
      %656 = vmatpush1.msra.mxu0 0.0
      %657 = vmatprep.subr.mxu0 0.0
      %658 = vmatpush1.msra.mxu0 0.0
      %659 = vmatprep.subr.mxu0 0.0
      %660 = vmatpush1.msra.mxu0 0.0
      %661 = vmatprep.subr.mxu0 0.0
      %662 = vmatpush1.msra.mxu0 0.0
      %663 = vmatprep.subr.mxu0 0.0
      %664 = vmatpush1.msra.mxu0 0.0
      %665 = vmatprep.subr.mxu0 0.0
      %666 = vmatpush1.msra.mxu0 0.0
      %667 = vmatprep.subr.mxu0 0.0
      %668 = vmatpush1.msra.mxu0 0.0
      %669 = vmatprep.subr.mxu0 0.0
      %670 = vmatpush1.msra.mxu0 0.0
      %671 = vmatprep.subr.mxu0 0.0
      %672 = vmatpush1.msra.mxu0 0.0
      %673 = vmatprep.subr.mxu0 0.0
      %674 = vmatpush1.msra.mxu0 0.0
      %675 = vmatprep.subr.mxu0 0.0
      %676 = vmatpush1.msra.mxu0 0.0
      %677 = vmatprep.subr.mxu0 0.0
      %678 = vmatpush1.msra.mxu0 0.0
      %679 = vmatprep.subr.mxu0 0.0
      %680 = vmatpush1.msra.mxu0 0.0
      %681 = vmatprep.subr.mxu0 0.0
      %682 = vmatpush1.msra.mxu0 0.0
      %683 = vmatprep.subr.mxu0 0.0
      %684 = vmatpush1.msra.mxu0 0.0
      %685 = vmatprep.subr.mxu0 0.0
      %686 = vmatpush1.msra.mxu0 0.0
      %687 = vmatprep.subr.mxu0 0.0
      %688 = vmatpush1.msra.mxu0 0.0
      %689 = vmatprep.mubr.f32.mxu0 0.0
      %690 = vmatmul.mubr.f32.gmra.mrb[0].mxu0 %v619
      %v691 = vpop.f32.mrb[0].mxu0
      %v692 = vadd.f32 0.0, %v691
      %v693 = vpop.f32.mrb[0].mxu0
      %v694 = vadd.f32 0.0, %v693
      %695 = vdwg.mxu0
      %v696 = vadd.f32 %v591, %v692
      %v697 = vadd.f32 %v592, %v694
      %v698 = vld [vmem:[%s272] sm:$0xff]
      %v699 = vld [vmem:[%s272 + $0x8] sm:$0xf]
      %s700 = scalar_lea.vmem %s1, 32
      %v701 = vld [vmem:[%s700] sm:$0xff]
      %v704 = vcombine.high %v698, %v698
      %705 = vrot.lane.b32.xlu0 %v698, 111
      %v706 = vpop.permute.xlu0 %705
      %707 = vrot.lane.b32.xlu0 %v704, 111
      %v708 = vpop.permute.xlu0 %707
      %709 = vrot.lane.b32.xlu0 %v699, 111
      %v710 = vpop.permute.xlu0 %709
      %vm711 = vcmask 908288
      %v712 = vsel %vm711, %v706, %v708
      %v713 = vsel %vm711, %v708, %v710
      %v715 = vsel %vm316, %v701, 0
      %v717 = vsel %vm320, %v712, 0
      %v719 = vsel %vm320, %v713, 0
      %721 = vmatprep.subr.mxu0 %v719
      %722 = vmatpush1.msra.mxu0 %v717
      %723 = vmatprep.subr.mxu0 0.0
      %724 = vmatpush1.msra.mxu0 0.0
      %725 = vmatprep.subr.mxu0 0.0
      %726 = vmatpush1.msra.mxu0 0.0
      %727 = vmatprep.subr.mxu0 0.0
      %728 = vmatpush1.msra.mxu0 0.0
      %729 = vmatprep.subr.mxu0 0.0
      %730 = vmatpush1.msra.mxu0 0.0
      %731 = vmatprep.subr.mxu0 0.0
      %732 = vmatpush1.msra.mxu0 0.0
      %733 = vmatprep.subr.mxu0 0.0
      %734 = vmatpush1.msra.mxu0 0.0
      %735 = vmatprep.subr.mxu0 0.0
      %736 = vmatpush1.msra.mxu0 0.0
      %737 = vmatprep.subr.mxu0 0.0
      %738 = vmatpush1.msra.mxu0 0.0
      %739 = vmatprep.subr.mxu0 0.0
      %740 = vmatpush1.msra.mxu0 0.0
      %741 = vmatprep.subr.mxu0 0.0
      %742 = vmatpush1.msra.mxu0 0.0
      %743 = vmatprep.subr.mxu0 0.0
      %744 = vmatpush1.msra.mxu0 0.0
      %745 = vmatprep.subr.mxu0 0.0
      %746 = vmatpush1.msra.mxu0 0.0
      %747 = vmatprep.subr.mxu0 0.0
      %748 = vmatpush1.msra.mxu0 0.0
      %749 = vmatprep.subr.mxu0 0.0
      %750 = vmatpush1.msra.mxu0 0.0
      %751 = vmatprep.subr.mxu0 0.0
      %752 = vmatpush1.msra.mxu0 0.0
      %753 = vmatprep.subr.mxu0 0.0
      %754 = vmatpush1.msra.mxu0 0.0
      %755 = vmatprep.subr.mxu0 0.0
      %756 = vmatpush1.msra.mxu0 0.0
      %757 = vmatprep.subr.mxu0 0.0
      %758 = vmatpush1.msra.mxu0 0.0
      %759 = vmatprep.subr.mxu0 0.0
      %760 = vmatpush1.msra.mxu0 0.0
      %761 = vmatprep.subr.mxu0 0.0
      %762 = vmatpush1.msra.mxu0 0.0
      %763 = vmatprep.subr.mxu0 0.0
      %764 = vmatpush1.msra.mxu0 0.0
      %765 = vmatprep.subr.mxu0 0.0
      %766 = vmatpush1.msra.mxu0 0.0
      %767 = vmatprep.subr.mxu0 0.0
      %768 = vmatpush1.msra.mxu0 0.0
      %769 = vmatprep.subr.mxu0 0.0
      %770 = vmatpush1.msra.mxu0 0.0
      %771 = vmatprep.subr.mxu0 0.0
      %772 = vmatpush1.msra.mxu0 0.0
      %773 = vmatprep.subr.mxu0 0.0
      %774 = vmatpush1.msra.mxu0 0.0
      %775 = vmatprep.subr.mxu0 0.0
      %776 = vmatpush1.msra.mxu0 0.0
      %777 = vmatprep.subr.mxu0 0.0
      %778 = vmatpush1.msra.mxu0 0.0
      %779 = vmatprep.subr.mxu0 0.0
      %780 = vmatpush1.msra.mxu0 0.0
      %781 = vmatprep.subr.mxu0 0.0
      %782 = vmatpush1.msra.mxu0 0.0
      %783 = vmatprep.subr.mxu0 0.0
      %784 = vmatpush1.msra.mxu0 0.0
      %785 = vmatprep.mubr.f32.mxu0 0.0
      %786 = vmatmul.mubr.f32.gmra.mrb[0].mxu0 %v715
      %v787 = vpop.f32.mrb[0].mxu0
      %v788 = vadd.f32 0.0, %v787
      %v789 = vpop.f32.mrb[0].mxu0
      %v790 = vadd.f32 0.0, %v789
      %791 = vdwg.mxu0
      %v792 = vadd.f32 %v696, %v788
      %v793 = vadd.f32 %v697, %v790
      %v794 = vld [vmem:[%s272] sm:$0xff]
      %v795 = vld [vmem:[%s272 + $0x8] sm:$0xf]
      %796 = vrot.lane.b32.xlu0 %v489, 18
      %v797 = vpop.permute.xlu0 %796
      %v798 = vrot.slane %v797, 4
      %vm799 = vcmask 146432
      %v800 = vsel %vm799, %v798, %v797
      %v803 = vmul.f32 %v794, %v800
      %v804 = vmul.f32 %v795, %v798
      %s805 = scalar_lea.vmem %s1, 40
      %v806 = vld [vmem:[%s805] sm:$0xff]
      %v809 = vcombine.high %v803, %v803
      %810 = vrot.lane.b32.xlu0 %v803, 110
      %v811 = vpop.permute.xlu0 %810
      %812 = vrot.lane.b32.xlu0 %v809, 110
      %v813 = vpop.permute.xlu0 %812
      %814 = vrot.lane.b32.xlu0 %v804, 110
      %v815 = vpop.permute.xlu0 %814
      %vm816 = vcmask 900096
      %v817 = vsel %vm816, %v811, %v813
      %v818 = vsel %vm816, %v813, %v815
      %v820 = vsel %vm316, %v806, 0
      %v822 = vsel %vm320, %v817, 0
      %v824 = vsel %vm320, %v818, 0
      %826 = vmatprep.subr.mxu0 %v824
      %827 = vmatpush1.msra.mxu0 %v822
      %828 = vmatprep.subr.mxu0 0.0
      %829 = vmatpush1.msra.mxu0 0.0
      %830 = vmatprep.subr.mxu0 0.0
      %831 = vmatpush1.msra.mxu0 0.0
      %832 = vmatprep.subr.mxu0 0.0
      %833 = vmatpush1.msra.mxu0 0.0
      %834 = vmatprep.subr.mxu0 0.0
      %835 = vmatpush1.msra.mxu0 0.0
      %836 = vmatprep.subr.mxu0 0.0
      %837 = vmatpush1.msra.mxu0 0.0
      %838 = vmatprep.subr.mxu0 0.0
      %839 = vmatpush1.msra.mxu0 0.0
      %840 = vmatprep.subr.mxu0 0.0
      %841 = vmatpush1.msra.mxu0 0.0
      %842 = vmatprep.subr.mxu0 0.0
      %843 = vmatpush1.msra.mxu0 0.0
      %844 = vmatprep.subr.mxu0 0.0
      %845 = vmatpush1.msra.mxu0 0.0
      %846 = vmatprep.subr.mxu0 0.0
      %847 = vmatpush1.msra.mxu0 0.0
      %848 = vmatprep.subr.mxu0 0.0
      %849 = vmatpush1.msra.mxu0 0.0
      %850 = vmatprep.subr.mxu0 0.0
      %851 = vmatpush1.msra.mxu0 0.0
      %852 = vmatprep.subr.mxu0 0.0
      %853 = vmatpush1.msra.mxu0 0.0
      %854 = vmatprep.subr.mxu0 0.0
      %855 = vmatpush1.msra.mxu0 0.0
      %856 = vmatprep.subr.mxu0 0.0
      %857 = vmatpush1.msra.mxu0 0.0
      %858 = vmatprep.subr.mxu0 0.0
      %859 = vmatpush1.msra.mxu0 0.0
      %860 = vmatprep.subr.mxu0 0.0
      %861 = vmatpush1.msra.mxu0 0.0
      %862 = vmatprep.subr.mxu0 0.0
      %863 = vmatpush1.msra.mxu0 0.0
      %864 = vmatprep.subr.mxu0 0.0
      %865 = vmatpush1.msra.mxu0 0.0
      %866 = vmatprep.subr.mxu0 0.0
      %867 = vmatpush1.msra.mxu0 0.0
      %868 = vmatprep.subr.mxu0 0.0
      %869 = vmatpush1.msra.mxu0 0.0
      %870 = vmatprep.subr.mxu0 0.0
      %871 = vmatpush1.msra.mxu0 0.0
      %872 = vmatprep.subr.mxu0 0.0
      %873 = vmatpush1.msra.mxu0 0.0
      %874 = vmatprep.subr.mxu0 0.0
      %875 = vmatpush1.msra.mxu0 0.0
      %876 = vmatprep.subr.mxu0 0.0
      %877 = vmatpush1.msra.mxu0 0.0
      %878 = vmatprep.subr.mxu0 0.0
      %879 = vmatpush1.msra.mxu0 0.0
      %880 = vmatprep.subr.mxu0 0.0
      %881 = vmatpush1.msra.mxu0 0.0
      %882 = vmatprep.subr.mxu0 0.0
      %883 = vmatpush1.msra.mxu0 0.0
      %884 = vmatprep.subr.mxu0 0.0
      %885 = vmatpush1.msra.mxu0 0.0
      %886 = vmatprep.subr.mxu0 0.0
      %887 = vmatpush1.msra.mxu0 0.0
      %888 = vmatprep.subr.mxu0 0.0
      %889 = vmatpush1.msra.mxu0 0.0
      %890 = vmatprep.mubr.f32.mxu0 0.0
      %891 = vmatmul.mubr.f32.gmra.mrb[0].mxu0 %v820
      %v892 = vpop.f32.mrb[0].mxu0
      %v893 = vadd.f32 0.0, %v892
      %v894 = vpop.f32.mrb[0].mxu0
      %v895 = vadd.f32 0.0, %v894
      %896 = vdwg.mxu0
      %v897 = vadd.f32 %v792, %v893
      %v898 = vadd.f32 %v793, %v895
      %v899 = vld [vmem:[%s272] sm:$0xff]
      %v900 = vld [vmem:[%s272 + $0x8] sm:$0xf]
      %901 = vrot.lane.b32.xlu0 %v297, 32
      %v902 = vpop.permute.xlu0 %901
      %v903 = vrot.slane %v902, 4
      %vm904 = vcmask 261120
      %v905 = vsel %vm904, %v903, %v902
      %v908 = vmul.f32 %v899, %v905
      %v909 = vmul.f32 %v900, %v903
      %s910 = scalar_lea.vmem %s1, 48
      %v911 = vld [vmem:[%s910] sm:$0xff]
      %v914 = vcombine.high %v908, %v908
      %915 = vrot.lane.b32.xlu0 %v908, 96
      %v916 = vpop.permute.xlu0 %915
      %917 = vrot.lane.b32.xlu0 %v914, 96
      %v918 = vpop.permute.xlu0 %917
      %919 = vrot.lane.b32.xlu0 %v909, 96
      %v920 = vpop.permute.xlu0 %919
      %vm921 = vcmask 785408
      %v922 = vsel %vm921, %v916, %v918
      %v923 = vsel %vm921, %v918, %v920
      %v925 = vsel %vm316, %v911, 0
      %v927 = vsel %vm320, %v922, 0
      %v929 = vsel %vm320, %v923, 0
      %931 = vmatprep.subr.mxu0 %v929
      %932 = vmatpush1.msra.mxu0 %v927
      %933 = vmatprep.subr.mxu0 0.0
      %934 = vmatpush1.msra.mxu0 0.0
      %935 = vmatprep.subr.mxu0 0.0
      %936 = vmatpush1.msra.mxu0 0.0
      %937 = vmatprep.subr.mxu0 0.0
      %938 = vmatpush1.msra.mxu0 0.0
      %939 = vmatprep.subr.mxu0 0.0
      %940 = vmatpush1.msra.mxu0 0.0
      %941 = vmatprep.subr.mxu0 0.0
      %942 = vmatpush1.msra.mxu0 0.0
      %943 = vmatprep.subr.mxu0 0.0
      %944 = vmatpush1.msra.mxu0 0.0
      %945 = vmatprep.subr.mxu0 0.0
      %946 = vmatpush1.msra.mxu0 0.0
      %947 = vmatprep.subr.mxu0 0.0
      %948 = vmatpush1.msra.mxu0 0.0
      %949 = vmatprep.subr.mxu0 0.0
      %950 = vmatpush1.msra.mxu0 0.0
      %951 = vmatprep.subr.mxu0 0.0
      %952 = vmatpush1.msra.mxu0 0.0
      %953 = vmatprep.subr.mxu0 0.0
      %954 = vmatpush1.msra.mxu0 0.0
      %955 = vmatprep.subr.mxu0 0.0
      %956 = vmatpush1.msra.mxu0 0.0
      %957 = vmatprep.subr.mxu0 0.0
      %958 = vmatpush1.msra.mxu0 0.0
      %959 = vmatprep.subr.mxu0 0.0
      %960 = vmatpush1.msra.mxu0 0.0
      %961 = vmatprep.subr.mxu0 0.0
      %962 = vmatpush1.msra.mxu0 0.0
      %963 = vmatprep.subr.mxu0 0.0
      %964 = vmatpush1.msra.mxu0 0.0
      %965 = vmatprep.subr.mxu0 0.0
      %966 = vmatpush1.msra.mxu0 0.0
      %967 = vmatprep.subr.mxu0 0.0
      %968 = vmatpush1.msra.mxu0 0.0
      %969 = vmatprep.subr.mxu0 0.0
      %970 = vmatpush1.msra.mxu0 0.0
      %971 = vmatprep.subr.mxu0 0.0
      %972 = vmatpush1.msra.mxu0 0.0
      %973 = vmatprep.subr.mxu0 0.0
      %974 = vmatpush1.msra.mxu0 0.0
      %975 = vmatprep.subr.mxu0 0.0
      %976 = vmatpush1.msra.mxu0 0.0
      %977 = vmatprep.subr.mxu0 0.0
      %978 = vmatpush1.msra.mxu0 0.0
      %979 = vmatprep.subr.mxu0 0.0
      %980 = vmatpush1.msra.mxu0 0.0
      %981 = vmatprep.subr.mxu0 0.0
      %982 = vmatpush1.msra.mxu0 0.0
      %983 = vmatprep.subr.mxu0 0.0
      %984 = vmatpush1.msra.mxu0 0.0
      %985 = vmatprep.subr.mxu0 0.0
      %986 = vmatpush1.msra.mxu0 0.0
      %987 = vmatprep.subr.mxu0 0.0
      %988 = vmatpush1.msra.mxu0 0.0
      %989 = vmatprep.subr.mxu0 0.0
      %990 = vmatpush1.msra.mxu0 0.0
      %991 = vmatprep.subr.mxu0 0.0
      %992 = vmatpush1.msra.mxu0 0.0
      %993 = vmatprep.subr.mxu0 0.0
      %994 = vmatpush1.msra.mxu0 0.0
      %995 = vmatprep.mubr.f32.mxu0 0.0
      %996 = vmatmul.mubr.f32.gmra.mrb[0].mxu0 %v925
      %v997 = vpop.f32.mrb[0].mxu0
      %v998 = vadd.f32 0.0, %v997
      %v999 = vpop.f32.mrb[0].mxu0
      %v1000 = vadd.f32 0.0, %v999
      %1001 = vdwg.mxu0
      %v1002 = vadd.f32 %v897, %v998
      %v1003 = vadd.f32 %v898, %v1000
      %v1004 = vld [vmem:[%s272] sm:$0xff]
      %v1005 = vld [vmem:[%s272 + $0x8] sm:$0xf]
      %s1006 = scalar_lea.vmem %s1, 56
      %v1007 = vld [vmem:[%s1006] sm:$0xff]
      %v1010 = vcombine.high %v1004, %v1004
      %1011 = vrot.lane.b32.xlu0 %v1004, 95
      %v1012 = vpop.permute.xlu0 %1011
      %1013 = vrot.lane.b32.xlu0 %v1010, 95
      %v1014 = vpop.permute.xlu0 %1013
      %1015 = vrot.lane.b32.xlu0 %v1005, 95
      %v1016 = vpop.permute.xlu0 %1015
      %vm1017 = vcmask 777216
      %v1018 = vsel %vm1017, %v1012, %v1014
      %v1019 = vsel %vm1017, %v1014, %v1016
      %v1021 = vsel %vm316, %v1007, 0
      %v1023 = vsel %vm320, %v1018, 0
      %v1025 = vsel %vm320, %v1019, 0
      %1027 = vmatprep.subr.mxu0 %v1025
      %1028 = vmatpush1.msra.mxu0 %v1023
      %1029 = vmatprep.subr.mxu0 0.0
      %1030 = vmatpush1.msra.mxu0 0.0
      %1031 = vmatprep.subr.mxu0 0.0
      %1032 = vmatpush1.msra.mxu0 0.0
      %1033 = vmatprep.subr.mxu0 0.0
      %1034 = vmatpush1.msra.mxu0 0.0
      %1035 = vmatprep.subr.mxu0 0.0
      %1036 = vmatpush1.msra.mxu0 0.0
      %1037 = vmatprep.subr.mxu0 0.0
      %1038 = vmatpush1.msra.mxu0 0.0
      %1039 = vmatprep.subr.mxu0 0.0
      %1040 = vmatpush1.msra.mxu0 0.0
      %1041 = vmatprep.subr.mxu0 0.0
      %1042 = vmatpush1.msra.mxu0 0.0
      %1043 = vmatprep.subr.mxu0 0.0
      %1044 = vmatpush1.msra.mxu0 0.0
      %1045 = vmatprep.subr.mxu0 0.0
      %1046 = vmatpush1.msra.mxu0 0.0
      %1047 = vmatprep.subr.mxu0 0.0
      %1048 = vmatpush1.msra.mxu0 0.0
      %1049 = vmatprep.subr.mxu0 0.0
      %1050 = vmatpush1.msra.mxu0 0.0
      %1051 = vmatprep.subr.mxu0 0.0
      %1052 = vmatpush1.msra.mxu0 0.0
      %1053 = vmatprep.subr.mxu0 0.0
      %1054 = vmatpush1.msra.mxu0 0.0
      %1055 = vmatprep.subr.mxu0 0.0
      %1056 = vmatpush1.msra.mxu0 0.0
      %1057 = vmatprep.subr.mxu0 0.0
      %1058 = vmatpush1.msra.mxu0 0.0
      %1059 = vmatprep.subr.mxu0 0.0
      %1060 = vmatpush1.msra.mxu0 0.0
      %1061 = vmatprep.subr.mxu0 0.0
      %1062 = vmatpush1.msra.mxu0 0.0
      %1063 = vmatprep.subr.mxu0 0.0
      %1064 = vmatpush1.msra.mxu0 0.0
      %1065 = vmatprep.subr.mxu0 0.0
      %1066 = vmatpush1.msra.mxu0 0.0
      %1067 = vmatprep.subr.mxu0 0.0
      %1068 = vmatpush1.msra.mxu0 0.0
      %1069 = vmatprep.subr.mxu0 0.0
      %1070 = vmatpush1.msra.mxu0 0.0
      %1071 = vmatprep.subr.mxu0 0.0
      %1072 = vmatpush1.msra.mxu0 0.0
      %1073 = vmatprep.subr.mxu0 0.0
      %1074 = vmatpush1.msra.mxu0 0.0
      %1075 = vmatprep.subr.mxu0 0.0
      %1076 = vmatpush1.msra.mxu0 0.0
      %1077 = vmatprep.subr.mxu0 0.0
      %1078 = vmatpush1.msra.mxu0 0.0
      %1079 = vmatprep.subr.mxu0 0.0
      %1080 = vmatpush1.msra.mxu0 0.0
      %1081 = vmatprep.subr.mxu0 0.0
      %1082 = vmatpush1.msra.mxu0 0.0
      %1083 = vmatprep.subr.mxu0 0.0
      %1084 = vmatpush1.msra.mxu0 0.0
      %1085 = vmatprep.subr.mxu0 0.0
      %1086 = vmatpush1.msra.mxu0 0.0
      %1087 = vmatprep.subr.mxu0 0.0
      %1088 = vmatpush1.msra.mxu0 0.0
      %1089 = vmatprep.subr.mxu0 0.0
      %1090 = vmatpush1.msra.mxu0 0.0
      %1091 = vmatprep.mubr.f32.mxu0 0.0
      %1092 = vmatmul.mubr.f32.gmra.mrb[0].mxu0 %v1021
      %v1093 = vpop.f32.mrb[0].mxu0
      %v1094 = vadd.f32 0.0, %v1093
      %v1095 = vpop.f32.mrb[0].mxu0
      %v1096 = vadd.f32 0.0, %v1095
      %1097 = vdwg.mxu0
      %v1098 = vadd.f32 %v1002, %v1094
      %v1099 = vadd.f32 %v1003, %v1096
      %v1100 = vld [vmem:[%s272] sm:$0xff]
      %v1101 = vld [vmem:[%s272 + $0x8] sm:$0xf]
      %1102 = vrot.lane.b32.xlu0 %v489, 34
      %v1103 = vpop.permute.xlu0 %1102
      %v1104 = vrot.slane %v1103, 4
      %vm1105 = vcmask 277504
      %v1106 = vsel %vm1105, %v1104, %v1103
      %v1109 = vmul.f32 %v1100, %v1106
      %v1110 = vmul.f32 %v1101, %v1104
      %s1111 = scalar_lea.vmem %s1, 64
      %v1112 = vld [vmem:[%s1111] sm:$0xff]
      %v1115 = vcombine.high %v1109, %v1109
      %1116 = vrot.lane.b32.xlu0 %v1109, 94
      %v1117 = vpop.permute.xlu0 %1116
      %1118 = vrot.lane.b32.xlu0 %v1115, 94
      %v1119 = vpop.permute.xlu0 %1118
      %1120 = vrot.lane.b32.xlu0 %v1110, 94
      %v1121 = vpop.permute.xlu0 %1120
      %vm1122 = vcmask 769024
      %v1123 = vsel %vm1122, %v1117, %v1119
      %v1124 = vsel %vm1122, %v1119, %v1121
      %v1126 = vsel %vm316, %v1112, 0
      %v1128 = vsel %vm320, %v1123, 0
      %v1130 = vsel %vm320, %v1124, 0
      %1132 = vmatprep.subr.mxu0 %v1130
      %1133 = vmatpush1.msra.mxu0 %v1128
      %1134 = vmatprep.subr.mxu0 0.0
      %1135 = vmatpush1.msra.mxu0 0.0
      %1136 = vmatprep.subr.mxu0 0.0
      %1137 = vmatpush1.msra.mxu0 0.0
      %1138 = vmatprep.subr.mxu0 0.0
      %1139 = vmatpush1.msra.mxu0 0.0
      %1140 = vmatprep.subr.mxu0 0.0
      %1141 = vmatpush1.msra.mxu0 0.0
      %1142 = vmatprep.subr.mxu0 0.0
      %1143 = vmatpush1.msra.mxu0 0.0
      %1144 = vmatprep.subr.mxu0 0.0
      %1145 = vmatpush1.msra.mxu0 0.0
      %1146 = vmatprep.subr.mxu0 0.0
      %1147 = vmatpush1.msra.mxu0 0.0
      %1148 = vmatprep.subr.mxu0 0.0
      %1149 = vmatpush1.msra.mxu0 0.0
      %1150 = vmatprep.subr.mxu0 0.0
      %1151 = vmatpush1.msra.mxu0 0.0
      %1152 = vmatprep.subr.mxu0 0.0
      %1153 = vmatpush1.msra.mxu0 0.0
      %1154 = vmatprep.subr.mxu0 0.0
      %1155 = vmatpush1.msra.mxu0 0.0
      %1156 = vmatprep.subr.mxu0 0.0
      %1157 = vmatpush1.msra.mxu0 0.0
      %1158 = vmatprep.subr.mxu0 0.0
      %1159 = vmatpush1.msra.mxu0 0.0
      %1160 = vmatprep.subr.mxu0 0.0
      %1161 = vmatpush1.msra.mxu0 0.0
      %1162 = vmatprep.subr.mxu0 0.0
      %1163 = vmatpush1.msra.mxu0 0.0
      %1164 = vmatprep.subr.mxu0 0.0
      %1165 = vmatpush1.msra.mxu0 0.0
      %1166 = vmatprep.subr.mxu0 0.0
      %1167 = vmatpush1.msra.mxu0 0.0
      %1168 = vmatprep.subr.mxu0 0.0
      %1169 = vmatpush1.msra.mxu0 0.0
      %1170 = vmatprep.subr.mxu0 0.0
      %1171 = vmatpush1.msra.mxu0 0.0
      %1172 = vmatprep.subr.mxu0 0.0
      %1173 = vmatpush1.msra.mxu0 0.0
      %1174 = vmatprep.subr.mxu0 0.0
      %1175 = vmatpush1.msra.mxu0 0.0
      %1176 = vmatprep.subr.mxu0 0.0
      %1177 = vmatpush1.msra.mxu0 0.0
      %1178 = vmatprep.subr.mxu0 0.0
      %1179 = vmatpush1.msra.mxu0 0.0
      %1180 = vmatprep.subr.mxu0 0.0
      %1181 = vmatpush1.msra.mxu0 0.0
      %1182 = vmatprep.subr.mxu0 0.0
      %1183 = vmatpush1.msra.mxu0 0.0
      %1184 = vmatprep.subr.mxu0 0.0
      %1185 = vmatpush1.msra.mxu0 0.0
      %1186 = vmatprep.subr.mxu0 0.0
      %1187 = vmatpush1.msra.mxu0 0.0
      %1188 = vmatprep.subr.mxu0 0.0
      %1189 = vmatpush1.msra.mxu0 0.0
      %1190 = vmatprep.subr.mxu0 0.0
      %1191 = vmatpush1.msra.mxu0 0.0
      %1192 = vmatprep.subr.mxu0 0.0
      %1193 = vmatpush1.msra.mxu0 0.0
      %1194 = vmatprep.subr.mxu0 0.0
      %1195 = vmatpush1.msra.mxu0 0.0
      %1196 = vmatprep.mubr.f32.mxu0 0.0
      %1197 = vmatmul.mubr.f32.gmra.mrb[0].mxu0 %v1126
      %v1198 = vpop.f32.mrb[0].mxu0
      %v1199 = vadd.f32 0.0, %v1198
      %v1200 = vpop.f32.mrb[0].mxu0
      %v1201 = vadd.f32 0.0, %v1200
      %1202 = vdwg.mxu0
      %v1203 = vadd.f32 %v1098, %v1199
      %v1204 = vadd.f32 %v1099, %v1201
      %v1205 = vld [vmem:[%s3] sm:$0xff]
      %vm1206 = vcmask 64512
      %v1208 = vsel %vm1206, %v1205, 0
      %1210 = vmatprep.subr.mxu0 %v1204
      %1211 = vmatpush1.msra.mxu0 %v1203
      %1212 = vmatprep.subr.mxu0 0.0
      %1213 = vmatpush1.msra.mxu0 0.0
      %1214 = vmatprep.subr.mxu0 0.0
      %1215 = vmatpush1.msra.mxu0 0.0
      %1216 = vmatprep.subr.mxu0 0.0
      %1217 = vmatpush1.msra.mxu0 0.0
      %1218 = vmatprep.subr.mxu0 0.0
      %1219 = vmatpush1.msra.mxu0 0.0
      %1220 = vmatprep.subr.mxu0 0.0
      %1221 = vmatpush1.msra.mxu0 0.0
      %1222 = vmatprep.subr.mxu0 0.0
      %1223 = vmatpush1.msra.mxu0 0.0
      %1224 = vmatprep.subr.mxu0 0.0
      %1225 = vmatpush1.msra.mxu0 0.0
      %1226 = vmatprep.subr.mxu0 0.0
      %1227 = vmatpush1.msra.mxu0 0.0
      %1228 = vmatprep.subr.mxu0 0.0
      %1229 = vmatpush1.msra.mxu0 0.0
      %1230 = vmatprep.subr.mxu0 0.0
      %1231 = vmatpush1.msra.mxu0 0.0
      %1232 = vmatprep.subr.mxu0 0.0
      %1233 = vmatpush1.msra.mxu0 0.0
      %1234 = vmatprep.subr.mxu0 0.0
      %1235 = vmatpush1.msra.mxu0 0.0
      %1236 = vmatprep.subr.mxu0 0.0
      %1237 = vmatpush1.msra.mxu0 0.0
      %1238 = vmatprep.subr.mxu0 0.0
      %1239 = vmatpush1.msra.mxu0 0.0
      %1240 = vmatprep.subr.mxu0 0.0
      %1241 = vmatpush1.msra.mxu0 0.0
      %1242 = vmatprep.subr.mxu0 0.0
      %1243 = vmatpush1.msra.mxu0 0.0
      %1244 = vmatprep.subr.mxu0 0.0
      %1245 = vmatpush1.msra.mxu0 0.0
      %1246 = vmatprep.subr.mxu0 0.0
      %1247 = vmatpush1.msra.mxu0 0.0
      %1248 = vmatprep.subr.mxu0 0.0
      %1249 = vmatpush1.msra.mxu0 0.0
      %1250 = vmatprep.subr.mxu0 0.0
      %1251 = vmatpush1.msra.mxu0 0.0
      %1252 = vmatprep.subr.mxu0 0.0
      %1253 = vmatpush1.msra.mxu0 0.0
      %1254 = vmatprep.subr.mxu0 0.0
      %1255 = vmatpush1.msra.mxu0 0.0
      %1256 = vmatprep.subr.mxu0 0.0
      %1257 = vmatpush1.msra.mxu0 0.0
      %1258 = vmatprep.subr.mxu0 0.0
      %1259 = vmatpush1.msra.mxu0 0.0
      %1260 = vmatprep.subr.mxu0 0.0
      %1261 = vmatpush1.msra.mxu0 0.0
      %1262 = vmatprep.subr.mxu0 0.0
      %1263 = vmatpush1.msra.mxu0 0.0
      %1264 = vmatprep.subr.mxu0 0.0
      %1265 = vmatpush1.msra.mxu0 0.0
      %1266 = vmatprep.subr.mxu0 0.0
      %1267 = vmatpush1.msra.mxu0 0.0
      %1268 = vmatprep.subr.mxu0 0.0
      %1269 = vmatpush1.msra.mxu0 0.0
      %1270 = vmatprep.subr.mxu0 0.0
      %1271 = vmatpush1.msra.mxu0 0.0
      %1272 = vmatprep.subr.mxu0 0.0
      %1273 = vmatpush1.msra.mxu0 0.0
      %1274 = vmatprep.mubr.f32.mxu0 0.0
      %1275 = vmatmul.mubr.f32.gmra.mrb[0].mxu0 %v1208
      %v1276 = vpop.f32.mrb[0].mxu0
      %v1277 = vadd.f32 0.0, %v1276
      %v1278 = vpop.f32.mrb[0].mxu0
      %v1279 = vadd.f32 0.0, %v1278
      %1280 = vdwg.mxu0
      %v1281 = vadd.f32 %v1277, %v1279
      %1282 = vadd.xlane.f32.xlu0 %v1281
      %v1283 = vpop.xlane.xlu0 %1282
      %v1284 = vsub.f32 %v1203, %v1283
      %v1285 = vsub.f32 %v1204, %v1283
      %v1286 = vmul.f32 %v1284, %v1284
      %v1287 = vmul.f32 %v1285, %v1285
      %1288 = vmatprep.subr.mxu0 %v1287
      %1289 = vmatpush1.msra.mxu0 %v1286
      %1290 = vmatprep.subr.mxu0 0.0
      %1291 = vmatpush1.msra.mxu0 0.0
      %1292 = vmatprep.subr.mxu0 0.0
      %1293 = vmatpush1.msra.mxu0 0.0
      %1294 = vmatprep.subr.mxu0 0.0
      %1295 = vmatpush1.msra.mxu0 0.0
      %1296 = vmatprep.subr.mxu0 0.0
      %1297 = vmatpush1.msra.mxu0 0.0
      %1298 = vmatprep.subr.mxu0 0.0
      %1299 = vmatpush1.msra.mxu0 0.0
      %1300 = vmatprep.subr.mxu0 0.0
      %1301 = vmatpush1.msra.mxu0 0.0
      %1302 = vmatprep.subr.mxu0 0.0
      %1303 = vmatpush1.msra.mxu0 0.0
      %1304 = vmatprep.subr.mxu0 0.0
      %1305 = vmatpush1.msra.mxu0 0.0
      %1306 = vmatprep.subr.mxu0 0.0
      %1307 = vmatpush1.msra.mxu0 0.0
      %1308 = vmatprep.subr.mxu0 0.0
      %1309 = vmatpush1.msra.mxu0 0.0
      %1310 = vmatprep.subr.mxu0 0.0
      %1311 = vmatpush1.msra.mxu0 0.0
      %1312 = vmatprep.subr.mxu0 0.0
      %1313 = vmatpush1.msra.mxu0 0.0
      %1314 = vmatprep.subr.mxu0 0.0
      %1315 = vmatpush1.msra.mxu0 0.0
      %1316 = vmatprep.subr.mxu0 0.0
      %1317 = vmatpush1.msra.mxu0 0.0
      %1318 = vmatprep.subr.mxu0 0.0
      %1319 = vmatpush1.msra.mxu0 0.0
      %1320 = vmatprep.subr.mxu0 0.0
      %1321 = vmatpush1.msra.mxu0 0.0
      %1322 = vmatprep.subr.mxu0 0.0
      %1323 = vmatpush1.msra.mxu0 0.0
      %1324 = vmatprep.subr.mxu0 0.0
      %1325 = vmatpush1.msra.mxu0 0.0
      %1326 = vmatprep.subr.mxu0 0.0
      %1327 = vmatpush1.msra.mxu0 0.0
      %1328 = vmatprep.subr.mxu0 0.0
      %1329 = vmatpush1.msra.mxu0 0.0
      %1330 = vmatprep.subr.mxu0 0.0
      %1331 = vmatpush1.msra.mxu0 0.0
      %1332 = vmatprep.subr.mxu0 0.0
      %1333 = vmatpush1.msra.mxu0 0.0
      %1334 = vmatprep.subr.mxu0 0.0
      %1335 = vmatpush1.msra.mxu0 0.0
      %1336 = vmatprep.subr.mxu0 0.0
      %1337 = vmatpush1.msra.mxu0 0.0
      %1338 = vmatprep.subr.mxu0 0.0
      %1339 = vmatpush1.msra.mxu0 0.0
      %1340 = vmatprep.subr.mxu0 0.0
      %1341 = vmatpush1.msra.mxu0 0.0
      %1342 = vmatprep.subr.mxu0 0.0
      %1343 = vmatpush1.msra.mxu0 0.0
      %1344 = vmatprep.subr.mxu0 0.0
      %1345 = vmatpush1.msra.mxu0 0.0
      %1346 = vmatprep.subr.mxu0 0.0
      %1347 = vmatpush1.msra.mxu0 0.0
      %1348 = vmatprep.subr.mxu0 0.0
      %1349 = vmatpush1.msra.mxu0 0.0
      %1350 = vmatprep.subr.mxu0 0.0
      %1351 = vmatpush1.msra.mxu0 0.0
      %1352 = vmatprep.mubr.f32.mxu0 0.0
      %1353 = vmatmul.mubr.f32.gmra.mrb[0].mxu0 %v1208
      %v1354 = vpop.f32.mrb[0].mxu0
      %v1355 = vadd.f32 0.0, %v1354
      %v1356 = vpop.f32.mrb[0].mxu0
      %v1357 = vadd.f32 0.0, %v1356
      %1358 = vdwg.mxu0
      %v1359 = vadd.f32 %v1355, %v1357
      %1360 = vadd.xlane.f32.xlu0 %v1359
      %v1361 = vpop.xlane.xlu0 %1360
      %v1362 = vadd.f32 %v1361, 1e-05
      %v1363 = vrsqrt.pop %v1362
      %v1364 = vmul.f32 %v1284, %v1363
      %v1365 = vmul.f32 %v1285, %v1363
      %v1366 = vld [vmem:[%s276] sm:$0xff]
      %1368 = vset.pattern.permute.xlu0 0
      %1369 = vperm.xlu0 %1368, %v1366
      %v1370 = vpop.permute.xlu0 %1369
      %v1372 = vmul.f32 %v1364, %v1370
      %v1373 = vmul.f32 %v1365, %v1370
      %v1374 = vld [vmem:[%s280] sm:$0xff]
      %1376 = vset.pattern.permute.xlu0 0
      %1377 = vperm.xlu0 %1376, %v1374
      %v1378 = vpop.permute.xlu0 %1377
      %v1380 = vadd.f32 %v1372, %v1378
      %v1381 = vadd.f32 %v1373, %v1378
      %v1382 = vsub.f32 0.0, %v1380
      %v1383 = vsub.f32 0.0, %v1381
      %v1384 = vmul.f32 %v1382, 1.442695
      %v1385 = vpow.pop %v1384
      %v1386 = vmul.f32 %v1383, 1.442695
      %v1387 = vpow.pop %v1386
      %v1388 = vadd.f32 %v1385, 1.0
      %v1389 = vadd.f32 %v1387, 1.0
      %v1390 = vrcp.pop %v1388
      %v1391 = vmul.f32 1.0, %v1390
      %v1392 = vrcp.pop %v1389
      %v1393 = vmul.f32 1.0, %v1392
      %v1394 = vmul.f32 %v1380, %v1391
      %v1395 = vmul.f32 %v1381, %v1393
      %1396 = vst [vmem:[%s285] sm:$0xff] %v1394
      %1397 = vst [vmem:[%s285 + $0x8] sm:$0xff] %v1395
      %p1398 = scmp.lt.s32.totalorder %s17, 1
      %s1399 = scalar_select %p1398, %s17, 1
      %s1400 = smul.addr %s1399, 2
      %s1401 = smul.addr %s1400, 8
      %s1402 = scalar_lea.vmem %s6, %s1401
      // Predicated region
      $region45: #{baseblock2d_forward.1} parent=43 // pred_check
        %p1403 = pneg %p176
      $region46: #{baseblock2d_forward.1} parent=43 // pred_check_branch
        %1405 = sbr.rel (%p1403) target = $region48
      $region47: #{baseblock2d_forward.1} parent=43 // pred_region
        _
      $region48: #{baseblock2d_forward.1} parent=43 // pred_fallthru
        _
    $region44: #{baseblock2d_forward.1} parent=5 // pred_fallthru
      _
    %p1406 = scmp.le.s32.totalorder 2, %s12
    // Predicated region
    $region49: #{baseblock2d_forward.1} parent=5 // pred_check
      %p1407 = pneg %p1406
    $region50: #{baseblock2d_forward.1} parent=5 // pred_check_branch
      %1409 = sbr.rel (%p1407) target = $region52
    $region51: #{baseblock2d_forward.1} parent=5 // pred_region
      %s1410 = ssub.s32 %s12, 2
      // Predicated region
      $region53: #{baseblock2d_forward.1} parent=51 // pred_check
        %p1411 = pneg %p182
      $region54: #{baseblock2d_forward.1} parent=51 // pred_check_branch
        %1413 = sbr.rel (%p1411) target = $region56
      $region55: #{baseblock2d_forward.1} parent=51 // pred_region
        %p1414 = scmp.lt.s32.totalorder %s18, 1
        %s1415 = scalar_select %p1414, %s18, 1
        %s1416 = smul.addr %s1415, 2
        %s1417 = smul.addr %s1416, 8
        %s1418 = scalar_lea.vmem %s6, %s1417
      $region56: #{baseblock2d_forward.1} parent=51 // pred_fallthru
        _
    $region52: #{baseblock2d_forward.1} parent=5 // pred_fallthru
      _
  $region6: #{baseblock2d_forward.1} parent=0 // loop_footer
    %s16 = sadd.s32 1, %s12
  $region7: #{baseblock2d_forward.1} parent=0 // loop_footer_branch
    %11 = sbr.rel target = $region3
  $region8: #{baseblock2d_forward.1} parent=0 // loop_exit
    _

</llo_original>
